<compile_context>
chip_gen: v7x
topology: tpu7x:2x2x1
jax: 0.10.0
libtpu: 0.0.40
codegen_flags: <defaults>
</compile_context>

<pallas_src>
import jax
import jax.numpy as jnp
from jax.experimental import pallas as pl
from jax.experimental.pallas import tpu as pltpu


def decoder_kernel(
    emb_ref, h_ref, enc_ref,                 # [B,emb] bf16, [B,Hp] f32, [B,S,E] bf16
    wah_ref, wae_ref, ba_ref,                # [Hp,Ap] bf16, [E,Ap] bf16, [1,Ap] f32
    wie_ref, wiw_ref, whh_ref,               # [emb,3G] bf16, [E,3G] bf16, [Hp,3G] bf16
    bi_ref, bh_ref,                          # [1,3G] f32, [1,3G] f32
    woh_ref, wow_ref, woe_ref, bo_ref,       # [Hp,Op] bf16, [E,Op] bf16, [emb,Op] bf16, [1,Op] f32
    out_ref, hnew_ref,                       # outputs: [B,Op] f32, [B,Hp] f32
):
    emb = emb_ref[...]                       # bf16
    h = h_ref[...]                           # f32, zero-padded beyond H
    enc = enc_ref[...]                       # bf16
    B, S, E = enc.shape
    GP = h.shape[1]                          # gate pitch == Hp (128-aligned)
    h_bf = h.astype(emb.dtype)

    # ---------------- additive attention ----------------
    # energy = tanh(h@W_ah + enc@W_ae + b_a); single lane-dense matmul for the enc part.
    he = jnp.dot(h_bf, wah_ref[...], preferred_element_type=jnp.float32)          # [B, Ap]
    ee = jnp.dot(enc.reshape(B * S, E), wae_ref[...],
                 preferred_element_type=jnp.float32).reshape(B, S, -1)            # [B, S, Ap]
    energy = jnp.tanh(he[:, None, :] + ee + ba_ref[...])                          # [B, S, Ap] f32
    scores = jnp.sum(energy, axis=2)                                              # [B, S]

    # softmax over src_len (EUP reciprocal instead of VPU divide)
    m = jnp.max(scores, axis=1, keepdims=True)
    ex = jnp.exp(scores - m)
    attn = ex * pl.reciprocal(jnp.sum(ex, axis=1, keepdims=True), approx=True)    # [B, S]

    # weighted encoder representation on the MXU (f32 accumulation, no f32 enc copy)
    weighted = jnp.einsum(
        'bqs,bse->bqe', attn.astype(enc.dtype)[:, None, :], enc,
        preferred_element_type=jnp.float32)[:, 0, :]                              # [B, E] f32
    w_bf = weighted.astype(emb.dtype)

    # ---------------- GRU cell (single step), split matmuls, 128-aligned gates ----------------
    gi = (jnp.dot(emb, wie_ref[...], preferred_element_type=jnp.float32)
          + jnp.dot(w_bf, wiw_ref[...], preferred_element_type=jnp.float32)
          + bi_ref[...])                                                          # [B, 3*GP]
    gh = jnp.dot(h_bf, whh_ref[...], preferred_element_type=jnp.float32) + bh_ref[...]

    r = jax.nn.sigmoid(gi[:, :GP] + gh[:, :GP])
    z = jax.nn.sigmoid(gi[:, GP:2 * GP] + gh[:, GP:2 * GP])
    n = jnp.tanh(gi[:, 2 * GP:] + r * gh[:, 2 * GP:])
    h_new = (1.0 - z) * n + z * h            # [B, Hp] f32; padded columns stay exactly 0

    # ---------------- output Linear, split matmuls, lane-dense store ----------------
    out = (jnp.dot(h_new.astype(emb.dtype), woh_ref[...], preferred_element_type=jnp.float32)
           + jnp.dot(w_bf, wow_ref[...], preferred_element_type=jnp.float32)
           + jnp.dot(emb, woe_ref[...], preferred_element_type=jnp.float32)
           + bo_ref[...])                                                         # [B, Op]

    out_ref[...] = out.astype(out_ref.dtype)
    hnew_ref[...] = h_new.astype(hnew_ref.dtype)


def decoder_forward(params, tokens, decoder_hidden, encoder_outputs, dims):
    """tokens: [B] int32, decoder_hidden: [B, dec_hid],
    encoder_outputs: [src_len, B, 2*enc_hid] (PyTorch convention)."""
    emb_dim, enc_hid, dec_hid, out_dim = (dims["emb"], dims["enc_hid"],
                                          dims["dec_hid"], dims["out"])
    E = 2 * enc_hid
    H = dec_hid
    bf16, f32 = jnp.bfloat16, jnp.float32

    def rup(n, m=128):
        return ((n + m - 1) // m) * m

    Hp, Op = rup(H), rup(out_dim)
    A = params["attn_w"].shape[0]
    Ap = rup(A)
    GP = Hp                                  # gate pitch

    def pad2(x, rows, cols, dt):
        return jnp.zeros((rows, cols), dt).at[:x.shape[0], :x.shape[1]].set(x.astype(dt))

    def pad_row(x, cols, dt):
        return jnp.zeros((1, cols), dt).at[0, :x.shape[0]].set(x.astype(dt))

    def gate_pad(w, in_dim, dt):             # w: [3H, in_dim] -> [in_dim, 3*GP], r|z|n blocks
        out = jnp.zeros((in_dim, 3 * GP), dt)
        for g in range(3):
            out = out.at[:, g * GP:g * GP + H].set(w[g * H:(g + 1) * H, :].T.astype(dt))
        return out

    def gate_pad_h(w, dt):                   # w_hh: [3H, H] -> [Hp, 3*GP]
        out = jnp.zeros((Hp, 3 * GP), dt)
        for g in range(3):
            out = out.at[:H, g * GP:g * GP + H].set(w[g * H:(g + 1) * H, :].T.astype(dt))
        return out

    def gate_pad_bias(b, dt):                # [3H] -> [1, 3*GP]
        out = jnp.zeros((1, 3 * GP), dt)
        for g in range(3):
            out = out.at[0, g * GP:g * GP + H].set(b[g * H:(g + 1) * H].astype(dt))
        return out

    # glue (XLA): embedding gather + batch-major encoder outputs; dropout == identity.
    emb = params["embedding"][tokens].astype(bf16)                    # [B, emb]
    enc_b = jnp.transpose(encoder_outputs, (1, 0, 2)).astype(bf16)    # [B, S, E]
    B, S, _ = enc_b.shape
    h0 = pad2(decoder_hidden, B, Hp, f32)                             # [B, Hp], zero-padded

    # ---- attention params: split + pre-transpose, lane-padded to Ap ----
    wa = params["attn_w"]                                             # [A, H+E]
    wah = pad2(wa[:, :H].T, Hp, Ap, bf16)                             # [Hp, Ap]
    wae = pad2(wa[:, H:].T, E, Ap, bf16)                              # [E, Ap]
    ba = pad_row(params["attn_b"], Ap, f32)                           # [1, Ap]

    # ---- GRU params: split by input operand, gate columns padded to 128-lane pitch ----
    w_ih = params["w_ih"]                                             # [3H, emb+E]
    wi_e = gate_pad(w_ih[:, :emb_dim], emb_dim, bf16)                 # [emb, 3*GP]
    wi_w = gate_pad(w_ih[:, emb_dim:], E, bf16)                       # [E,   3*GP]
    w_hh = gate_pad_h(params["w_hh"], bf16)                           # [Hp,  3*GP]
    b_i = gate_pad_bias(params["b_ih"], f32)                          # [1, 3*GP]
    b_h = gate_pad_bias(params["b_hh"], f32)                          # [1, 3*GP]

    # ---- output params: split by input operand (h_new, weighted, emb), lane-padded to Op ----
    wo = params["out_w"]                                              # [O, H+E+emb]
    wo_h = pad2(wo[:, :H].T, Hp, Op, bf16)                            # [Hp, Op]
    wo_w = pad2(wo[:, H:H + E].T, E, Op, bf16)                        # [E,  Op]
    wo_e = pad2(wo[:, H + E:].T, emb_dim, Op, bf16)                   # [emb,Op]
    b_o = pad_row(params["out_b"], Op, f32)                           # [1, Op]

    args = (emb, h0, enc_b,
            wah, wae, ba,
            wi_e, wi_w, w_hh, b_i, b_h,
            wo_h, wo_w, wo_e, b_o)

    vmem = pl.BlockSpec(memory_space=pltpu.MemorySpace.VMEM)
    out_p, h_p = pl.pallas_call(
        decoder_kernel,
        out_shape=(jax.ShapeDtypeStruct((B, Op), f32),
                   jax.ShapeDtypeStruct((B, Hp), f32)),
        in_specs=[vmem] * len(args),
        out_specs=(vmem, vmem),
    )(*args)

    # un-pad outside the kernel (kernel stores stay lane-dense)
    return out_p[:, :out_dim], h_p[:, :H]


def decoder_ref(params, tokens, h, encoder_outputs, dims):
    """pure-JAX fp32 reference mirroring the PyTorch forward."""
    H = dims["dec_hid"]
    emb_dim = dims["emb"]
    emb = params["embedding"][tokens]
    enc_b = jnp.transpose(encoder_outputs, (1, 0, 2))
    S = encoder_outputs.shape[0]
    rep_h = jnp.repeat(h[:, None, :], S, axis=1)
    energy = jnp.tanh(jnp.concatenate([rep_h, enc_b], axis=2) @ params["attn_w"].T
                      + params["attn_b"])
    a = jax.nn.softmax(energy.sum(-1), axis=1)
    weighted = jnp.einsum("bs,bse->be", a, enc_b)
    x = jnp.concatenate([emb, weighted], axis=1)
    gi = x @ params["w_ih"].T + params["b_ih"]
    gh = h @ params["w_hh"].T + params["b_hh"]
    r = jax.nn.sigmoid(gi[:, :H] + gh[:, :H])
    z = jax.nn.sigmoid(gi[:, H:2 * H] + gh[:, H:2 * H])
    n = jnp.tanh(gi[:, 2 * H:] + r * gh[:, 2 * H:])
    h_new = (1.0 - z) * n + z * h
    out = (jnp.concatenate([h_new, weighted, emb], axis=1) @ params["out_w"].T
           + params["out_b"])
    return out, h_new


if __name__ == "__main__":
    # small, forward-consistent shapes (emb_dim != 2*enc_hid_dim to catch split bugs)
    output_dim, emb_dim, enc_hid_dim, dec_hid_dim, attn_dim = 64, 48, 16, 32, 8
    batch, src_len = 2, 8
    E = 2 * enc_hid_dim
    dims = {"emb": emb_dim, "enc_hid": enc_hid_dim, "dec_hid": dec_hid_dim, "out": output_dim}

    key = jax.random.PRNGKey(0)
    ks = jax.random.split(key, 12)
    params = {
        "embedding": 0.1 * jax.random.normal(ks[0], (output_dim, emb_dim), jnp.float32),
        "attn_w":    0.1 * jax.random.normal(ks[1], (attn_dim, dec_hid_dim + E), jnp.float32),
        "attn_b":    0.1 * jax.random.normal(ks[2], (attn_dim,), jnp.float32),
        "w_ih":      0.1 * jax.random.normal(ks[3], (3 * dec_hid_dim, emb_dim + E), jnp.float32),
        "b_ih":      0.1 * jax.random.normal(ks[4], (3 * dec_hid_dim,), jnp.float32),
        "w_hh":      0.1 * jax.random.normal(ks[5], (3 * dec_hid_dim, dec_hid_dim), jnp.float32),
        "b_hh":      0.1 * jax.random.normal(ks[6], (3 * dec_hid_dim,), jnp.float32),
        "out_w":     0.1 * jax.random.normal(ks[7], (output_dim, dec_hid_dim + E + emb_dim), jnp.float32),
        "out_b":     0.1 * jax.random.normal(ks[8], (output_dim,), jnp.float32),
    }

    tokens = jax.random.randint(ks[9], (batch,), 0, output_dim, jnp.int32)
    decoder_hidden = 0.5 * jax.random.normal(ks[10], (batch, dec_hid_dim), jnp.float32)
    encoder_outputs = 0.5 * jax.random.normal(ks[11], (src_len, batch, E), jnp.float32)

    out, h_new = decoder_forward(params, tokens, decoder_hidden, encoder_outputs, dims)
    jax.block_until_ready((out, h_new))

    out_ref, h_ref = decoder_ref(params, tokens, decoder_hidden, encoder_outputs, dims)
    assert out.shape == (batch, output_dim) and h_new.shape == (batch, dec_hid_dim)
    # bf16 matmul operands + approx reciprocal => compare against fp32 reference with a
    # correspondingly looser (but still tight at these value scales) tolerance.
    assert jnp.allclose(out, out_ref, atol=2e-2, rtol=2e-2)
    assert jnp.allclose(h_new, h_ref, atol=2e-2, rtol=2e-2)

    print("KERNEL_OK")
</pallas_src>

<mosaic_0001>
module attributes {stable_mosaic.version = 11 : i64} {
  func.func @decoder_kernel(%arg0: memref<2x48xbf16, #tpu.memory_space<vmem>>, %arg1: memref<2x128xf32, #tpu.memory_space<vmem>>, %arg2: memref<2x8x32xbf16, #tpu.memory_space<vmem>>, %arg3: memref<128x128xbf16, #tpu.memory_space<vmem>>, %arg4: memref<32x128xbf16, #tpu.memory_space<vmem>>, %arg5: memref<1x128xf32, #tpu.memory_space<vmem>>, %arg6: memref<48x384xbf16, #tpu.memory_space<vmem>>, %arg7: memref<32x384xbf16, #tpu.memory_space<vmem>>, %arg8: memref<128x384xbf16, #tpu.memory_space<vmem>>, %arg9: memref<1x384xf32, #tpu.memory_space<vmem>>, %arg10: memref<1x384xf32, #tpu.memory_space<vmem>>, %arg11: memref<128x128xbf16, #tpu.memory_space<vmem>>, %arg12: memref<32x128xbf16, #tpu.memory_space<vmem>>, %arg13: memref<48x128xbf16, #tpu.memory_space<vmem>>, %arg14: memref<1x128xf32, #tpu.memory_space<vmem>>, %arg15: memref<2x128xf32, #tpu.memory_space<vmem>>, %arg16: memref<2x128xf32, #tpu.memory_space<vmem>>) attributes {dimension_semantics = [], scalar_prefetch = 0 : i64, scratch_operands = 0 : i64, tpu.core_type = #tpu.core_type<tc>} {
    %c0 = arith.constant 0 : index
    %c0_0 = arith.constant 0 : index
    %0 = vector.load %arg0[%c0, %c0_0] : memref<2x48xbf16, #tpu.memory_space<vmem>>, vector<2x48xbf16>
    %c0_1 = arith.constant 0 : index
    %c0_2 = arith.constant 0 : index
    %1 = vector.load %arg1[%c0_1, %c0_2] : memref<2x128xf32, #tpu.memory_space<vmem>>, vector<2x128xf32>
    %c0_3 = arith.constant 0 : index
    %c0_4 = arith.constant 0 : index
    %c0_5 = arith.constant 0 : index
    %2 = vector.load %arg2[%c0_3, %c0_4, %c0_5] : memref<2x8x32xbf16, #tpu.memory_space<vmem>>, vector<2x8x32xbf16>
    %3 = arith.truncf %1 : vector<2x128xf32> to vector<2x128xbf16>
    %c0_6 = arith.constant 0 : index
    %c0_7 = arith.constant 0 : index
    %4 = vector.load %arg3[%c0_6, %c0_7] : memref<128x128xbf16, #tpu.memory_space<vmem>>, vector<128x128xbf16>
    %cst = arith.constant dense<0.000000e+00> : vector<2x128xf32>
    %5 = tpu.matmul %3, %4, %cst {dimension_numbers = #tpu.dot_dimension_numbers<[1], [0], [0], [1], [0, 0, 1, 1], [], []>} : vector<2x128xbf16>, vector<128x128xbf16>, vector<2x128xf32> -> vector<2x128xf32>
    %6 = vector.shape_cast %2 : vector<2x8x32xbf16> to vector<16x32xbf16>
    %c0_8 = arith.constant 0 : index
    %c0_9 = arith.constant 0 : index
    %7 = vector.load %arg4[%c0_8, %c0_9] : memref<32x128xbf16, #tpu.memory_space<vmem>>, vector<32x128xbf16>
    %cst_10 = arith.constant dense<0.000000e+00> : vector<16x128xf32>
    %8 = tpu.matmul %6, %7, %cst_10 {dimension_numbers = #tpu.dot_dimension_numbers<[1], [0], [0], [1], [0, 0, 1, 1], [], []>} : vector<16x32xbf16>, vector<32x128xbf16>, vector<16x128xf32> -> vector<16x128xf32>
    %9 = vector.shape_cast %8 : vector<16x128xf32> to vector<2x8x128xf32>
    %10 = vector.shape_cast %5 : vector<2x128xf32> to vector<2x1x128xf32>
    %11 = vector.broadcast %10 : vector<2x1x128xf32> to vector<2x8x128xf32>
    %12 = arith.addf %11, %9 : vector<2x8x128xf32>
    %c0_11 = arith.constant 0 : index
    %c0_12 = arith.constant 0 : index
    %13 = vector.load %arg5[%c0_11, %c0_12] : memref<1x128xf32, #tpu.memory_space<vmem>>, vector<1x128xf32>
    %14 = vector.shape_cast %13 : vector<1x128xf32> to vector<1x1x128xf32>
    %15 = vector.broadcast %14 : vector<1x1x128xf32> to vector<2x8x128xf32>
    %16 = arith.addf %12, %15 : vector<2x8x128xf32>
    %17 = math.tanh %16 : vector<2x8x128xf32>
    %cst_13 = arith.constant dense<0.000000e+00> : vector<2x8xf32>
    %18 = vector.multi_reduction <add>, %17, %cst_13 [2] : vector<2x8x128xf32> to vector<2x8xf32>
    %cst_14 = arith.constant dense<0xFF800000> : vector<2xf32>
    %19 = vector.multi_reduction <maximumf>, %18, %cst_14 [1] : vector<2x8xf32> to vector<2xf32>
    %20 = vector.shape_cast %19 : vector<2xf32> to vector<2x1xf32>
    %21 = vector.broadcast %20 : vector<2x1xf32> to vector<2x8xf32>
    %22 = arith.subf %18, %21 : vector<2x8xf32>
    %23 = math.exp %22 : vector<2x8xf32>
    %cst_15 = arith.constant dense<0.000000e+00> : vector<2xf32>
    %24 = vector.multi_reduction <add>, %23, %cst_15 [1] : vector<2x8xf32> to vector<2xf32>
    %25 = vector.shape_cast %24 : vector<2xf32> to vector<2x1xf32>
    %26 = tpu.reciprocal %25 {approx = true} : vector<2x1xf32> -> vector<2x1xf32>
    %27 = vector.broadcast %26 : vector<2x1xf32> to vector<2x8xf32>
    %28 = arith.mulf %23, %27 : vector<2x8xf32>
    %29 = arith.truncf %28 : vector<2x8xf32> to vector<2x8xbf16>
    %30 = vector.shape_cast %29 : vector<2x8xbf16> to vector<2x1x8xbf16>
    "tpu.trace_start"() <{level = 10 : i32, message = "bqs,bse->bqe"}> : () -> ()
    %cst_16 = arith.constant dense<0.000000e+00> : vector<2x1x32xf32>
    %31 = tpu.matmul %30, %2, %cst_16 {dimension_numbers = #tpu.dot_dimension_numbers<[2], [1], [1], [2], [0, 0, 0, 1, 1, 2], [0], [0]>} : vector<2x1x8xbf16>, vector<2x8x32xbf16>, vector<2x1x32xf32> -> vector<2x1x32xf32>
    "tpu.trace_stop"() : () -> ()
    %32 = vector.shape_cast %31 : vector<2x1x32xf32> to vector<2x32xf32>
    %33 = arith.truncf %32 : vector<2x32xf32> to vector<2x32xbf16>
    %c0_17 = arith.constant 0 : index
    %c0_18 = arith.constant 0 : index
    %34 = vector.load %arg6[%c0_17, %c0_18] : memref<48x384xbf16, #tpu.memory_space<vmem>>, vector<48x384xbf16>
    %cst_19 = arith.constant dense<0.000000e+00> : vector<2x384xf32>
    %35 = tpu.matmul %0, %34, %cst_19 {dimension_numbers = #tpu.dot_dimension_numbers<[1], [0], [0], [1], [0, 0, 1, 1], [], []>} : vector<2x48xbf16>, vector<48x384xbf16>, vector<2x384xf32> -> vector<2x384xf32>
    %c0_20 = arith.constant 0 : index
    %c0_21 = arith.constant 0 : index
    %36 = vector.load %arg7[%c0_20, %c0_21] : memref<32x384xbf16, #tpu.memory_space<vmem>>, vector<32x384xbf16>
    %cst_22 = arith.constant dense<0.000000e+00> : vector<2x384xf32>
    %37 = tpu.matmul %33, %36, %cst_22 {dimension_numbers = #tpu.dot_dimension_numbers<[1], [0], [0], [1], [0, 0, 1, 1], [], []>} : vector<2x32xbf16>, vector<32x384xbf16>, vector<2x384xf32> -> vector<2x384xf32>
    %38 = arith.addf %35, %37 : vector<2x384xf32>
    %c0_23 = arith.constant 0 : index
    %c0_24 = arith.constant 0 : index
    %39 = vector.load %arg9[%c0_23, %c0_24] : memref<1x384xf32, #tpu.memory_space<vmem>>, vector<1x384xf32>
    %40 = vector.broadcast %39 : vector<1x384xf32> to vector<2x384xf32>
    %41 = arith.addf %38, %40 : vector<2x384xf32>
    %c0_25 = arith.constant 0 : index
    %c0_26 = arith.constant 0 : index
    %42 = vector.load %arg8[%c0_25, %c0_26] : memref<128x384xbf16, #tpu.memory_space<vmem>>, vector<128x384xbf16>
    %cst_27 = arith.constant dense<0.000000e+00> : vector<2x384xf32>
    %43 = tpu.matmul %3, %42, %cst_27 {dimension_numbers = #tpu.dot_dimension_numbers<[1], [0], [0], [1], [0, 0, 1, 1], [], []>} : vector<2x128xbf16>, vector<128x384xbf16>, vector<2x384xf32> -> vector<2x384xf32>
    %c0_28 = arith.constant 0 : index
    %c0_29 = arith.constant 0 : index
    %44 = vector.load %arg10[%c0_28, %c0_29] : memref<1x384xf32, #tpu.memory_space<vmem>>, vector<1x384xf32>
    %45 = vector.broadcast %44 : vector<1x384xf32> to vector<2x384xf32>
    %46 = arith.addf %43, %45 : vector<2x384xf32>
    %47 = vector.extract_strided_slice %41 {offsets = [0, 0], sizes = [2, 128], strides = [1, 1]} : vector<2x384xf32> to vector<2x128xf32>
    %48 = vector.extract_strided_slice %46 {offsets = [0, 0], sizes = [2, 128], strides = [1, 1]} : vector<2x384xf32> to vector<2x128xf32>
    %49 = arith.addf %47, %48 : vector<2x128xf32>
    %50 = arith.negf %49 : vector<2x128xf32>
    %51 = math.exp %50 : vector<2x128xf32>
    %cst_30 = arith.constant 1.000000e+00 : f32
    %52 = vector.broadcast %cst_30 : f32 to vector<2x128xf32>
    %53 = arith.addf %52, %51 : vector<2x128xf32>
    %54 = arith.divf %52, %53 : vector<2x128xf32>
    %55 = vector.extract_strided_slice %41 {offsets = [0, 128], sizes = [2, 128], strides = [1, 1]} : vector<2x384xf32> to vector<2x128xf32>
    %56 = vector.extract_strided_slice %46 {offsets = [0, 128], sizes = [2, 128], strides = [1, 1]} : vector<2x384xf32> to vector<2x128xf32>
    %57 = arith.addf %55, %56 : vector<2x128xf32>
    %58 = arith.negf %57 : vector<2x128xf32>
    %59 = math.exp %58 : vector<2x128xf32>
    %cst_31 = arith.constant 1.000000e+00 : f32
    %60 = vector.broadcast %cst_31 : f32 to vector<2x128xf32>
    %61 = arith.addf %60, %59 : vector<2x128xf32>
    %62 = arith.divf %60, %61 : vector<2x128xf32>
    %63 = vector.extract_strided_slice %41 {offsets = [0, 256], sizes = [2, 128], strides = [1, 1]} : vector<2x384xf32> to vector<2x128xf32>
    %64 = vector.extract_strided_slice %46 {offsets = [0, 256], sizes = [2, 128], strides = [1, 1]} : vector<2x384xf32> to vector<2x128xf32>
    %65 = arith.mulf %54, %64 : vector<2x128xf32>
    %66 = arith.addf %63, %65 : vector<2x128xf32>
    %67 = math.tanh %66 : vector<2x128xf32>
    %cst_32 = arith.constant 1.000000e+00 : f32
    %68 = vector.broadcast %cst_32 : f32 to vector<2x128xf32>
    %69 = arith.subf %68, %62 : vector<2x128xf32>
    %70 = arith.mulf %69, %67 : vector<2x128xf32>
    %71 = arith.mulf %62, %1 : vector<2x128xf32>
    %72 = arith.addf %70, %71 : vector<2x128xf32>
    %73 = arith.truncf %72 : vector<2x128xf32> to vector<2x128xbf16>
    %c0_33 = arith.constant 0 : index
    %c0_34 = arith.constant 0 : index
    %74 = vector.load %arg11[%c0_33, %c0_34] : memref<128x128xbf16, #tpu.memory_space<vmem>>, vector<128x128xbf16>
    %cst_35 = arith.constant dense<0.000000e+00> : vector<2x128xf32>
    %75 = tpu.matmul %73, %74, %cst_35 {dimension_numbers = #tpu.dot_dimension_numbers<[1], [0], [0], [1], [0, 0, 1, 1], [], []>} : vector<2x128xbf16>, vector<128x128xbf16>, vector<2x128xf32> -> vector<2x128xf32>
    %c0_36 = arith.constant 0 : index
    %c0_37 = arith.constant 0 : index
    %76 = vector.load %arg12[%c0_36, %c0_37] : memref<32x128xbf16, #tpu.memory_space<vmem>>, vector<32x128xbf16>
    %cst_38 = arith.constant dense<0.000000e+00> : vector<2x128xf32>
    %77 = tpu.matmul %33, %76, %cst_38 {dimension_numbers = #tpu.dot_dimension_numbers<[1], [0], [0], [1], [0, 0, 1, 1], [], []>} : vector<2x32xbf16>, vector<32x128xbf16>, vector<2x128xf32> -> vector<2x128xf32>
    %78 = arith.addf %75, %77 : vector<2x128xf32>
    %c0_39 = arith.constant 0 : index
    %c0_40 = arith.constant 0 : index
    %79 = vector.load %arg13[%c0_39, %c0_40] : memref<48x128xbf16, #tpu.memory_space<vmem>>, vector<48x128xbf16>
    %cst_41 = arith.constant dense<0.000000e+00> : vector<2x128xf32>
    %80 = tpu.matmul %0, %79, %cst_41 {dimension_numbers = #tpu.dot_dimension_numbers<[1], [0], [0], [1], [0, 0, 1, 1], [], []>} : vector<2x48xbf16>, vector<48x128xbf16>, vector<2x128xf32> -> vector<2x128xf32>
    %81 = arith.addf %78, %80 : vector<2x128xf32>
    %c0_42 = arith.constant 0 : index
    %c0_43 = arith.constant 0 : index
    %82 = vector.load %arg14[%c0_42, %c0_43] : memref<1x128xf32, #tpu.memory_space<vmem>>, vector<1x128xf32>
    %83 = vector.broadcast %82 : vector<1x128xf32> to vector<2x128xf32>
    %84 = arith.addf %81, %83 : vector<2x128xf32>
    %c0_44 = arith.constant 0 : index
    %c0_45 = arith.constant 0 : index
    %85 = vector.load %arg15[%c0_44, %c0_45] : memref<2x128xf32, #tpu.memory_space<vmem>>, vector<2x128xf32>
    tpu.vector_store %arg15[%c0_44, %c0_45], %84 {strides = array<i32>} : memref<2x128xf32, #tpu.memory_space<vmem>>, vector<2x128xf32>,
    %c0_46 = arith.constant 0 : index
    %c0_47 = arith.constant 0 : index
    %86 = vector.load %arg16[%c0_46, %c0_47] : memref<2x128xf32, #tpu.memory_space<vmem>>, vector<2x128xf32>
    tpu.vector_store %arg16[%c0_46, %c0_47], %72 {strides = array<i32>} : memref<2x128xf32, #tpu.memory_space<vmem>>, vector<2x128xf32>,
    return
  }
}

</mosaic_0001>

<llo_original>
// kernel: tpu_custom_call.1
$region0: #{tpu_custom_call.1}
  #allocation0 [shape = 'u32[]', space=smem, size = 0x4, offset = 0x4, fixed_abs, tag = 'smem constant byte address 0x4 - core index']
  #allocation1 [shape = 'u32[144,128]{1,0:T(1,128)}', space=vmem, size = 0x12000, scoped, tag = 'internal scratch']
  %s0 = inlined_call_operand.hbm [shape: bf16[2,48], index: 0, kind: input, shape index: {}]
  %s1 = inlined_call_operand.hbm [shape: f32[2,128], index: 1, kind: input, shape index: {}]
  %s2 = inlined_call_operand.hbm [shape: bf16[2,8,32], index: 2, kind: input, shape index: {}]
  %s3 = inlined_call_operand.hbm [shape: bf16[128,128], index: 3, kind: input, shape index: {}]
  %s4 = inlined_call_operand.hbm [shape: bf16[32,128], index: 4, kind: input, shape index: {}]
  %s5 = inlined_call_operand.vmem [shape: f32[1,128], index: 5, kind: input, shape index: {}]
  %s6 = inlined_call_operand.hbm [shape: bf16[48,384], index: 6, kind: input, shape index: {}]
  %s7 = inlined_call_operand.hbm [shape: bf16[32,384], index: 7, kind: input, shape index: {}]
  %s8 = inlined_call_operand.hbm [shape: bf16[128,384], index: 8, kind: input, shape index: {}]
  %s9 = inlined_call_operand.vmem [shape: f32[1,384], index: 9, kind: input, shape index: {}]
  %s10 = inlined_call_operand.vmem [shape: f32[1,384], index: 10, kind: input, shape index: {}]
  %s11 = inlined_call_operand.hbm [shape: bf16[128,128], index: 11, kind: input, shape index: {}]
  %s12 = inlined_call_operand.vmem [shape: bf16[32,128], index: 12, kind: input, shape index: {}]
  %s13 = inlined_call_operand.vmem [shape: bf16[48,128], index: 13, kind: input, shape index: {}]
  %s14 = inlined_call_operand.vmem [shape: f32[1,128], index: 14, kind: input, shape index: {}]
  %s15 = inlined_call_operand.hbm [shape: f32[2,128], index: 15, kind: output, shape index: {0}]
  %s16 = inlined_call_operand.hbm [shape: f32[2,128], index: 16, kind: output, shape index: {1}]
  %17 = xla_tuple %s15, %s16
  %s18 = sld [smem:[#allocation0]]
  $region114: #{tpu_custom_call.1} parent=0
    _
  %s20 = ssub.s32 1, %s18
  %s21 = scalar_select 0, %s20, %s18
  $region1: #{tpu_custom_call.1} parent=0
    #allocation2 [shape = 'u8[512]{0}', space=vmem, size = 0x400, scoped, tag = 'input window, operand 0, single buffered']
    #allocation3 [shape = 's32[1]{0}', space=sflag, size = 0x4, scoped, tag = 'scoped memory for tpu_custom_call.1']
    #allocation4 [shape = 's32[1]{0}', space=sflag, size = 0x4, scoped, tag = 'scoped memory for tpu_custom_call.1']
    #allocation5 [shape = 'u8[1024]{0}', space=vmem, size = 0x400, scoped, tag = 'input window, operand 1, single buffered']
    #allocation6 [shape = 's32[1]{0}', space=sflag, size = 0x4, scoped, tag = 'scoped memory for tpu_custom_call.1']
    #allocation7 [shape = 'u8[4096]{0}', space=vmem, size = 0x1000, scoped, tag = 'input window, operand 2, single buffered']
    #allocation8 [shape = 'u8[32768]{0}', space=vmem, size = 0x8000, scoped, tag = 'input window, operand 3, single buffered']
    #allocation9 [shape = 's32[1]{0}', space=sflag, size = 0x4, scoped, tag = 'scoped memory for tpu_custom_call.1']
    #allocation10 [shape = 'u8[8192]{0}', space=vmem, size = 0x2000, scoped, tag = 'input window, operand 4, single buffered']
    #allocation11 [shape = 'u8[36864]{0}', space=vmem, size = 0x9000, scoped, tag = 'input window, operand 6, single buffered']
    #allocation12 [shape = 's32[1]{0}', space=sflag, size = 0x4, scoped, tag = 'scoped memory for tpu_custom_call.1']
    #allocation13 [shape = 'u8[24576]{0}', space=vmem, size = 0x6000, scoped, tag = 'input window, operand 7, single buffered']
    #allocation14 [shape = 'u8[98304]{0}', space=vmem, size = 0x18000, scoped, tag = 'input window, operand 8, single buffered']
    #allocation15 [shape = 's32[1]{0}', space=sflag, size = 0x4, scoped, tag = 'scoped memory for tpu_custom_call.1']
    #allocation16 [shape = 'u8[32768]{0}', space=vmem, size = 0x8000, scoped, tag = 'input window, operand 11, single buffered']
    #allocation17 [shape = 'u8[1024]{0}', space=vmem, size = 0x400, scoped, tag = 'output window, operand 0, single buffered']
    #allocation18 [shape = 'u8[1024]{0}', space=vmem, size = 0x400, scoped, tag = 'output window, operand 1, single buffered']
    #allocation19 [shape = 's32[1]{0}', space=sflag, size = 0x4, scoped, tag = 'scoped memory for tpu_custom_call.1']
    %22 = vsyncpa [#allocation3], 0
    %23 = vsyncpa [#allocation6], 0
    %24 = vsyncpa [#allocation9], 0
    %25 = vsyncpa [#allocation12], 0
    %26 = vsyncpa [#allocation15], 0
    %27 = vsyncpa [#allocation4], 0
    %28 = vsyncpa [#allocation19], 0
    // Predicated region
    $region2: #{tpu_custom_call.1} parent=1 // pred_check
      _
    $region3: #{tpu_custom_call.1} parent=1 // pred_check_branch
      %30 = sbr.rel (0) target = $region5
    $region4: #{tpu_custom_call.1} parent=1 // pred_region
      %s32 = ssub.s32 16, 16
      %33 = vsyncadd [#allocation3], %s32
      %s35 = sshll.u32 [#allocation2], 4
      %s36 = int_to_ptr.vmem [resolvable:$true] %s35
      %38 = dma.hbm_to_vmem [thread:$0]  %s0, 16, %s36, [#allocation3]
    $region5: #{tpu_custom_call.1} parent=1 // pred_fallthru
      _
    // Predicated region
    $region6: #{tpu_custom_call.1} parent=1 // pred_check
      _
    $region7: #{tpu_custom_call.1} parent=1 // pred_check_branch
      %40 = sbr.rel (0) target = $region9
    $region8: #{tpu_custom_call.1} parent=1 // pred_region
      %s42 = ssub.s32 32, 32
      %43 = vsyncadd [#allocation6], %s42
      %s45 = sshll.u32 [#allocation5], 4
      %s46 = int_to_ptr.vmem [resolvable:$true] %s45
      %48 = dma.hbm_to_vmem [thread:$0]  %s1, 32, %s46, [#allocation6]
    $region9: #{tpu_custom_call.1} parent=1 // pred_fallthru
      _
    // Predicated region
    $region10: #{tpu_custom_call.1} parent=1 // pred_check
      _
    $region11: #{tpu_custom_call.1} parent=1 // pred_check_branch
      %50 = sbr.rel (0) target = $region13
    $region12: #{tpu_custom_call.1} parent=1 // pred_region
      %s52 = ssub.s32 128, 128
      %53 = vsyncadd [#allocation6], %s52
      %s54 = sshll.u32 [#allocation7], 4
      %s55 = int_to_ptr.vmem [resolvable:$true] %s54
      %60 = dma.hbm_to_vmem [thread:$0]  %s2, 128, %s55, [#allocation6], 64, 64, 4
    $region13: #{tpu_custom_call.1} parent=1 // pred_fallthru
      _
    // Predicated region
    $region14: #{tpu_custom_call.1} parent=1 // pred_check
      _
    $region15: #{tpu_custom_call.1} parent=1 // pred_check_branch
      %62 = sbr.rel (0) target = $region17
    $region16: #{tpu_custom_call.1} parent=1 // pred_region
      %s64 = ssub.s32 1024, 1024
      %65 = vsyncadd [#allocation9], %s64
      %s66 = sshll.u32 [#allocation8], 4
      %s67 = int_to_ptr.vmem [resolvable:$true] %s66
      %72 = dma.hbm_to_vmem [thread:$0]  %s3, 1024, %s67, [#allocation9], 64, 64, 4
    $region17: #{tpu_custom_call.1} parent=1 // pred_fallthru
      _
    // Predicated region
    $region18: #{tpu_custom_call.1} parent=1 // pred_check
      _
    $region19: #{tpu_custom_call.1} parent=1 // pred_check_branch
      %74 = sbr.rel (0) target = $region21
    $region20: #{tpu_custom_call.1} parent=1 // pred_region
      %s76 = ssub.s32 256, 256
      %77 = vsyncadd [#allocation9], %s76
      %s78 = sshll.u32 [#allocation10], 4
      %s79 = int_to_ptr.vmem [resolvable:$true] %s78
      %84 = dma.hbm_to_vmem [thread:$0]  %s4, 256, %s79, [#allocation9], 64, 64, 4
    $region21: #{tpu_custom_call.1} parent=1 // pred_fallthru
      _
    // Predicated region
    $region22: #{tpu_custom_call.1} parent=1 // pred_check
      _
    $region23: #{tpu_custom_call.1} parent=1 // pred_check_branch
      %86 = sbr.rel (0) target = $region25
    $region24: #{tpu_custom_call.1} parent=1 // pred_region
      _
    $region25: #{tpu_custom_call.1} parent=1 // pred_fallthru
      _
    // Predicated region
    $region26: #{tpu_custom_call.1} parent=1 // pred_check
      _
    $region27: #{tpu_custom_call.1} parent=1 // pred_check_branch
      %88 = sbr.rel (0) target = $region29
    $region28: #{tpu_custom_call.1} parent=1 // pred_region
      %s90 = ssub.s32 1152, 1152
      %91 = vsyncadd [#allocation12], %s90
      %s92 = sshll.u32 [#allocation11], 4
      %s93 = int_to_ptr.vmem [resolvable:$true] %s92
      %98 = dma.hbm_to_vmem [thread:$0]  %s6, 1152, %s93, [#allocation12], 192, 192, 12
    $region29: #{tpu_custom_call.1} parent=1 // pred_fallthru
      _
    // Predicated region
    $region30: #{tpu_custom_call.1} parent=1 // pred_check
      _
    $region31: #{tpu_custom_call.1} parent=1 // pred_check_branch
      %100 = sbr.rel (0) target = $region33
    $region32: #{tpu_custom_call.1} parent=1 // pred_region
      %s102 = ssub.s32 768, 768
      %103 = vsyncadd [#allocation12], %s102
      %s104 = sshll.u32 [#allocation13], 4
      %s105 = int_to_ptr.vmem [resolvable:$true] %s104
      %110 = dma.hbm_to_vmem [thread:$0]  %s7, 768, %s105, [#allocation12], 192, 192, 12
    $region33: #{tpu_custom_call.1} parent=1 // pred_fallthru
      _
    // Predicated region
    $region34: #{tpu_custom_call.1} parent=1 // pred_check
      _
    $region35: #{tpu_custom_call.1} parent=1 // pred_check_branch
      %112 = sbr.rel (0) target = $region37
    $region36: #{tpu_custom_call.1} parent=1 // pred_region
      %s114 = ssub.s32 3072, 3072
      %115 = vsyncadd [#allocation15], %s114
      %s116 = sshll.u32 [#allocation14], 4
      %s117 = int_to_ptr.vmem [resolvable:$true] %s116
      %122 = dma.hbm_to_vmem [thread:$0]  %s8, 3072, %s117, [#allocation15], 192, 192, 12
    $region37: #{tpu_custom_call.1} parent=1 // pred_fallthru
      _
    // Predicated region
    $region38: #{tpu_custom_call.1} parent=1 // pred_check
      _
    $region39: #{tpu_custom_call.1} parent=1 // pred_check_branch
      %124 = sbr.rel (0) target = $region41
    $region40: #{tpu_custom_call.1} parent=1 // pred_region
      _
    $region41: #{tpu_custom_call.1} parent=1 // pred_fallthru
      _
    // Predicated region
    $region42: #{tpu_custom_call.1} parent=1 // pred_check
      _
    $region43: #{tpu_custom_call.1} parent=1 // pred_check_branch
      %126 = sbr.rel (0) target = $region45
    $region44: #{tpu_custom_call.1} parent=1 // pred_region
      _
    $region45: #{tpu_custom_call.1} parent=1 // pred_fallthru
      _
    // Predicated region
    $region46: #{tpu_custom_call.1} parent=1 // pred_check
      _
    $region47: #{tpu_custom_call.1} parent=1 // pred_check_branch
      %128 = sbr.rel (0) target = $region49
    $region48: #{tpu_custom_call.1} parent=1 // pred_region
      %s130 = ssub.s32 1024, 1024
      %131 = vsyncadd [#allocation15], %s130
      %s132 = sshll.u32 [#allocation16], 4
      %s133 = int_to_ptr.vmem [resolvable:$true] %s132
      %138 = dma.hbm_to_vmem [thread:$0]  %s11, 1024, %s133, [#allocation15], 64, 64, 4
    $region49: #{tpu_custom_call.1} parent=1 // pred_fallthru
      _
    // Predicated region
    $region50: #{tpu_custom_call.1} parent=1 // pred_check
      _
    $region51: #{tpu_custom_call.1} parent=1 // pred_check_branch
      %140 = sbr.rel (0) target = $region53
    $region52: #{tpu_custom_call.1} parent=1 // pred_region
      _
    $region53: #{tpu_custom_call.1} parent=1 // pred_fallthru
      _
    // Predicated region
    $region54: #{tpu_custom_call.1} parent=1 // pred_check
      _
    $region55: #{tpu_custom_call.1} parent=1 // pred_check_branch
      %142 = sbr.rel (0) target = $region57
    $region56: #{tpu_custom_call.1} parent=1 // pred_region
      _
    $region57: #{tpu_custom_call.1} parent=1 // pred_fallthru
      _
    // Predicated region
    $region58: #{tpu_custom_call.1} parent=1 // pred_check
      _
    $region59: #{tpu_custom_call.1} parent=1 // pred_check_branch
      %144 = sbr.rel (0) target = $region61
    $region60: #{tpu_custom_call.1} parent=1 // pred_region
      _
    $region61: #{tpu_custom_call.1} parent=1 // pred_fallthru
      _
    // Predicated region
    $region62: #{tpu_custom_call.1} parent=1 // pred_check
      _
    $region63: #{tpu_custom_call.1} parent=1 // pred_check_branch
      %146 = sbr.rel (0) target = $region65
    $region64: #{tpu_custom_call.1} parent=1 // pred_region
      %147 = dma.done [#allocation3], 16
    $region65: #{tpu_custom_call.1} parent=1 // pred_fallthru
      _
    // Predicated region
    $region66: #{tpu_custom_call.1} parent=1 // pred_check
      _
    $region67: #{tpu_custom_call.1} parent=1 // pred_check_branch
      %149 = sbr.rel (0) target = $region69
    $region68: #{tpu_custom_call.1} parent=1 // pred_region
      %150 = dma.done [#allocation6], 32
    $region69: #{tpu_custom_call.1} parent=1 // pred_fallthru
      _
    // Predicated region
    $region70: #{tpu_custom_call.1} parent=1 // pred_check
      _
    $region71: #{tpu_custom_call.1} parent=1 // pred_check_branch
      %152 = sbr.rel (0) target = $region73
    $region72: #{tpu_custom_call.1} parent=1 // pred_region
      %153 = dma.done [#allocation6], 128
    $region73: #{tpu_custom_call.1} parent=1 // pred_fallthru
      _
    // Predicated region
    $region74: #{tpu_custom_call.1} parent=1 // pred_check
      _
    $region75: #{tpu_custom_call.1} parent=1 // pred_check_branch
      %155 = sbr.rel (0) target = $region77
    $region76: #{tpu_custom_call.1} parent=1 // pred_region
      %156 = dma.done [#allocation9], 1024
    $region77: #{tpu_custom_call.1} parent=1 // pred_fallthru
      _
    // Predicated region
    $region78: #{tpu_custom_call.1} parent=1 // pred_check
      _
    $region79: #{tpu_custom_call.1} parent=1 // pred_check_branch
      %158 = sbr.rel (0) target = $region81
    $region80: #{tpu_custom_call.1} parent=1 // pred_region
      %159 = dma.done [#allocation9], 256
    $region81: #{tpu_custom_call.1} parent=1 // pred_fallthru
      _
    // Predicated region
    $region82: #{tpu_custom_call.1} parent=1 // pred_check
      _
    $region83: #{tpu_custom_call.1} parent=1 // pred_check_branch
      %161 = sbr.rel (0) target = $region85
    $region84: #{tpu_custom_call.1} parent=1 // pred_region
      %162 = dma.done [#allocation12], 1152
    $region85: #{tpu_custom_call.1} parent=1 // pred_fallthru
      _
    // Predicated region
    $region86: #{tpu_custom_call.1} parent=1 // pred_check
      _
    $region87: #{tpu_custom_call.1} parent=1 // pred_check_branch
      %164 = sbr.rel (0) target = $region89
    $region88: #{tpu_custom_call.1} parent=1 // pred_region
      %165 = dma.done [#allocation12], 768
    $region89: #{tpu_custom_call.1} parent=1 // pred_fallthru
      _
    // Predicated region
    $region90: #{tpu_custom_call.1} parent=1 // pred_check
      _
    $region91: #{tpu_custom_call.1} parent=1 // pred_check_branch
      %167 = sbr.rel (0) target = $region93
    $region92: #{tpu_custom_call.1} parent=1 // pred_region
      %168 = dma.done [#allocation15], 3072
    $region93: #{tpu_custom_call.1} parent=1 // pred_fallthru
      _
    // Predicated region
    $region94: #{tpu_custom_call.1} parent=1 // pred_check
      _
    $region95: #{tpu_custom_call.1} parent=1 // pred_check_branch
      %170 = sbr.rel (0) target = $region97
    $region96: #{tpu_custom_call.1} parent=1 // pred_region
      %171 = dma.done [#allocation15], 1024
    $region97: #{tpu_custom_call.1} parent=1 // pred_fallthru
      _
    %v173 = vld [vmem:[#allocation2] sm:$0x1]
    %v174 = vld [vmem:[#allocation5] sm:$0x3]
    %v175 = vld [vmem:[#allocation7] sm:$0xf]
    %v176 = vld [vmem:[#allocation7 + $0x4] sm:$0xf]
    %v177 = vpack.c.bf16 %v174, %v174
    %v178 = vld [vmem:[#allocation8] sm:$0xf]
    %v179 = vld [vmem:[#allocation8 + $0x4] sm:$0xf]
    %v180 = vld [vmem:[#allocation8 + $0x8] sm:$0xf]
    %v181 = vld [vmem:[#allocation8 + $0xc] sm:$0xf]
    %v182 = vld [vmem:[#allocation8 + $0x10] sm:$0xf]
    %v183 = vld [vmem:[#allocation8 + $0x14] sm:$0xf]
    %v184 = vld [vmem:[#allocation8 + $0x18] sm:$0xf]
    %v185 = vld [vmem:[#allocation8 + $0x1c] sm:$0xf]
    %v186 = vld [vmem:[#allocation8 + $0x20] sm:$0xf]
    %v187 = vld [vmem:[#allocation8 + $0x24] sm:$0xf]
    %v188 = vld [vmem:[#allocation8 + $0x28] sm:$0xf]
    %v189 = vld [vmem:[#allocation8 + $0x2c] sm:$0xf]
    %v190 = vld [vmem:[#allocation8 + $0x30] sm:$0xf]
    %v191 = vld [vmem:[#allocation8 + $0x34] sm:$0xf]
    %v192 = vld [vmem:[#allocation8 + $0x38] sm:$0xf]
    %v193 = vld [vmem:[#allocation8 + $0x3c] sm:$0xf]
    %v210 = vunpack.c.l.b16 %v178
    %v211 = vunpack.c.l.b16 %v179
    %v212 = vunpack.c.l.b16 %v180
    %v213 = vunpack.c.l.b16 %v181
    %v214 = vunpack.c.l.b16 %v182
    %v215 = vunpack.c.l.b16 %v183
    %v216 = vunpack.c.l.b16 %v184
    %v217 = vunpack.c.l.b16 %v185
    %v218 = vunpack.c.l.b16 %v186
    %v219 = vunpack.c.l.b16 %v187
    %v220 = vunpack.c.l.b16 %v188
    %v221 = vunpack.c.l.b16 %v189
    %v222 = vunpack.c.l.b16 %v190
    %v223 = vunpack.c.l.b16 %v191
    %v224 = vunpack.c.l.b16 %v192
    %v225 = vunpack.c.l.b16 %v193
    %v226 = vpack.c.b16 %v211, %v210
    %v227 = vpack.c.b16 %v213, %v212
    %v228 = vpack.c.b16 %v215, %v214
    %v229 = vpack.c.b16 %v217, %v216
    %v230 = vpack.c.b16 %v219, %v218
    %v231 = vpack.c.b16 %v221, %v220
    %v232 = vpack.c.b16 %v223, %v222
    %v233 = vpack.c.b16 %v225, %v224
    %242 = vmatprep.subr.bf16.mxu0 0
    %243 = vmatpush1.bf16.msra.mxu0 %v226
    %244 = vmatprep.subr.bf16.mxu0 0
    %245 = vmatpush1.bf16.msra.mxu0 %v227
    %246 = vmatprep.subr.bf16.mxu0 0
    %247 = vmatpush1.bf16.msra.mxu0 %v228
    %248 = vmatprep.subr.bf16.mxu0 0
    %249 = vmatpush1.bf16.msra.mxu0 %v229
    %250 = vmatprep.subr.bf16.mxu0 0
    %251 = vmatpush1.bf16.msra.mxu0 %v230
    %252 = vmatprep.subr.bf16.mxu0 0
    %253 = vmatpush1.bf16.msra.mxu0 %v231
    %254 = vmatprep.subr.bf16.mxu0 0
    %255 = vmatpush1.bf16.msra.mxu0 %v232
    %256 = vmatprep.subr.bf16.mxu0 0
    %257 = vmatpush1.bf16.msra.mxu0 %v233
    %258 = vmatprep.subr.bf16.mxu0 0
    %259 = vmatpush1.bf16.msra.mxu0 0
    %260 = vmatprep.subr.bf16.mxu0 0
    %261 = vmatpush1.bf16.msra.mxu0 0
    %262 = vmatprep.subr.bf16.mxu0 0
    %263 = vmatpush1.bf16.msra.mxu0 0
    %264 = vmatprep.subr.bf16.mxu0 0
    %265 = vmatpush1.bf16.msra.mxu0 0
    %266 = vmatprep.subr.bf16.mxu0 0
    %267 = vmatpush1.bf16.msra.mxu0 0
    %268 = vmatprep.subr.bf16.mxu0 0
    %269 = vmatpush1.bf16.msra.mxu0 0
    %270 = vmatprep.subr.bf16.mxu0 0
    %271 = vmatpush1.bf16.msra.mxu0 0
    %272 = vmatprep.subr.bf16.mxu0 0
    %273 = vmatpush1.bf16.msra.mxu0 0
    %274 = vmatprep.mubr.bf16.mxu0 0
    %275 = vmatmul.mubr.bf16.gmra.mrb[0].mxu0 %v177
    %v276 = vpop.f32.mrb[0].mxu0
    %v277 = vadd.f32 0.0, %v276
    %v278 = vpop.f32.mrb[0].mxu0
    %v279 = vpop.f32.mrb[0].mxu0
    %v280 = vpop.f32.mrb[0].mxu0
    %281 = vdwg.mxu0
    %v282 = vld [vmem:[#allocation10] sm:$0xf]
    %v283 = vld [vmem:[#allocation10 + $0x4] sm:$0xf]
    %v284 = vld [vmem:[#allocation10 + $0x8] sm:$0xf]
    %v285 = vld [vmem:[#allocation10 + $0xc] sm:$0xf]
    %v288 = vunpack.c.l.b16 %v175
    %v289 = vunpack.c.l.b16 %v176
    %v290 = vpack.c.b16 %v289, %v288
    %v295 = vunpack.c.l.b16 %v282
    %v296 = vunpack.c.l.b16 %v283
    %v297 = vunpack.c.l.b16 %v284
    %v298 = vunpack.c.l.b16 %v285
    %v299 = vpack.c.b16 %v296, %v295
    %v300 = vpack.c.b16 %v298, %v297
    %vm303 = vcmask 261120
    %v305 = vsel %vm303, %v290, 0
    %307 = vmatprep.subr.bf16.mxu0 0
    %308 = vmatpush1.bf16.msra.mxu0 %v299
    %309 = vmatprep.subr.bf16.mxu0 0
    %310 = vmatpush1.bf16.msra.mxu0 %v300
    %311 = vmatprep.subr.bf16.mxu0 0
    %312 = vmatpush1.bf16.msra.mxu0 0
    %313 = vmatprep.subr.bf16.mxu0 0
    %314 = vmatpush1.bf16.msra.mxu0 0
    %315 = vmatprep.subr.bf16.mxu0 0
    %316 = vmatpush1.bf16.msra.mxu0 0
    %317 = vmatprep.subr.bf16.mxu0 0
    %318 = vmatpush1.bf16.msra.mxu0 0
    %319 = vmatprep.subr.bf16.mxu0 0
    %320 = vmatpush1.bf16.msra.mxu0 0
    %321 = vmatprep.subr.bf16.mxu0 0
    %322 = vmatpush1.bf16.msra.mxu0 0
    %323 = vmatprep.subr.bf16.mxu0 0
    %324 = vmatpush1.bf16.msra.mxu0 0
    %325 = vmatprep.subr.bf16.mxu0 0
    %326 = vmatpush1.bf16.msra.mxu0 0
    %327 = vmatprep.subr.bf16.mxu0 0
    %328 = vmatpush1.bf16.msra.mxu0 0
    %329 = vmatprep.subr.bf16.mxu0 0
    %330 = vmatpush1.bf16.msra.mxu0 0
    %331 = vmatprep.subr.bf16.mxu0 0
    %332 = vmatpush1.bf16.msra.mxu0 0
    %333 = vmatprep.subr.bf16.mxu0 0
    %334 = vmatpush1.bf16.msra.mxu0 0
    %335 = vmatprep.subr.bf16.mxu0 0
    %336 = vmatpush1.bf16.msra.mxu0 0
    %337 = vmatprep.subr.bf16.mxu0 0
    %338 = vmatpush1.bf16.msra.mxu0 0
    %339 = vmatprep.mubr.bf16.mxu0 0
    %340 = vmatmul.mubr.bf16.gmra.mrb[0].mxu0 %v305
    %v341 = vpop.f32.mrb[0].mxu0
    %v342 = vadd.f32 0.0, %v341
    %v343 = vpop.f32.mrb[0].mxu0
    %v344 = vpop.f32.mrb[0].mxu0
    %v345 = vadd.f32 0.0, %v344
    %v346 = vpop.f32.mrb[0].mxu0
    %347 = vdwg.mxu0
    %v350 = vunpack.c.l.s4 1966171168
    %v351 = vunpack.c.0.s8 %v350
    %v352 = vlaneseq
    %v353 = vshrl.u32 %v352, 7
    %v354 = vsub.s32 %v351, %v353
    %v355 = vrot.slane %v277, %v354
    %v356 = vcombine.high %v355, %v355
    %v358 = vunpack.c.l.s4 1966171168
    %v359 = vunpack.c.0.s8 %v358
    %v360 = vlaneseq
    %v361 = vshrl.u32 %v360, 7
    %v362 = vsub.s32 %v359, %v361
    %v363 = vrot.slane %v355, %v362
    %v365 = vunpack.c.l.s4 1966171168
    %v366 = vunpack.c.0.s8 %v365
    %v367 = vlaneseq
    %v368 = vshrl.u32 %v367, 7
    %v369 = vsub.s32 %v366, %v368
    %v370 = vrot.slane %v356, %v369
    %v371 = vlaneseq
    %v372 = vshrl.u32 %v371, 7
    %v373 = vsub.s32 0, %v372
    %v374 = vrot.slane %v363, %v373
    %v375 = vlaneseq
    %v376 = vshrl.u32 %v375, 7
    %v377 = vsub.s32 0, %v376
    %v378 = vrot.slane %v370, %v377
    %v381 = vadd.f32 %v374, %v342
    %v382 = vadd.f32 %v378, %v345
    %v383 = vld [vmem:[%s5] sm:$0x1]
    %v385 = vlaneseq
    %v386 = vshrl.u32 %v385, 7
    %v387 = vsub.s32 0, %v386
    %v388 = vrot.slane %v383, %v387
    %v390 = vadd.f32 %v381, %v388
    %v391 = vadd.f32 %v382, %v388
    %v392 = vtanh.pop %v390
    %v393 = vtanh.pop %v391
    %394 = vadd.xlane.f32.xlu0 %v392
    %v395 = vpop.xlane.xlu0 %394
    %396 = vadd.xlane.f32.xlu0 %v393
    %v397 = vpop.xlane.xlu0 %396
    %v400 = vlaneseq
    %v401 = vand.u32 %v400, 127
    %v402 = vlaneseq
    %v403 = vshrl.u32 %v402, 7
    %v404 = vsub.s32 %v401, %v403
    %v405 = vrot.slane %v395, %v404
    %v406 = vlaneseq
    %v407 = vshrl.u32 %v406, 7
    %v408 = vsub.s32 %v401, %v407
    %v409 = vrot.slane %v397, %v408
    %vm410 = vcmask 1041409
    %v411 = vsel %vm410, %v409, %v405
    %vm413 = vcmask 58368
    %v414 = vsel %vm413, %v411, -inf
    %415 = vmax.xlane.f32.xlu0 %v414
    %v416 = vpop.xlane.xlu0 %415
    %v418 = vlaneseq
    %v419 = vshrl.u32 %v418, 7
    %v420 = vsub.s32 0, %v419
    %v421 = vrot.slane %v416, %v420
    %v422 = vlaneseq
    %v423 = vshrl.u32 %v422, 7
    %v424 = vsub.s32 1, %v423
    %v425 = vrot.slane %v416, %v424
    %v428 = vsub.f32 %v395, %v421
    %v429 = vsub.f32 %v397, %v425
    %v430 = vmul.f32 %v428, 1.442695
    %v431 = vpow.pop %v430
    %v432 = vmul.f32 %v429, 1.442695
    %v433 = vpow.pop %v432
    %436 = vset.pattern.permute.xlu0 0
    %437 = vperm.xlu0 %436, %v431
    %v438 = vpop.permute.xlu0 %437
    %439 = vset.pattern.permute.xlu0 0
    %440 = vperm.xlu0 %439, %v433
    %v441 = vpop.permute.xlu0 %440
    %v442 = vlaneseq
    %v443 = vshrl.u32 %v442, 7
    %v444 = vsub.s32 %v401, %v443
    %v445 = vrot.slane %v438, %v444
    %v446 = vlaneseq
    %v447 = vshrl.u32 %v446, 7
    %v448 = vsub.s32 %v401, %v447
    %v449 = vrot.slane %v441, %v448
    %v450 = vsel %vm410, %v449, %v445
    %v452 = vsel %vm413, %v450, 0.0
    %453 = vadd.xlane.f32.xlu0 %v452
    %v454 = vpop.xlane.xlu0 %453
    %v455 = vrcp.pop %v454
    %v457 = vlaneseq
    %v458 = vshrl.u32 %v457, 7
    %v459 = vsub.s32 0, %v458
    %v460 = vrot.slane %v455, %v459
    %v461 = vlaneseq
    %v462 = vshrl.u32 %v461, 7
    %v463 = vsub.s32 1, %v462
    %v464 = vrot.slane %v455, %v463
    %v467 = vmul.f32 %v431, %v460
    %v468 = vmul.f32 %v433, %v464
    %v469 = vpack.c.bf16 %v467, %v467
    %v470 = vpack.c.bf16 %v468, %v468
    %v472 = vunpack.c.l.b16 %v469
    %473 = vset.pattern.permute.xlu0 0
    %474 = vperm.xlu0 %473, %v472
    %v475 = vpop.permute.xlu0 %474
    %v476 = vlaneseq
    %v477 = vshrl.u32 %v476, 7
    %v478 = vsub.s32 %v401, %v477
    %v479 = vrot.slane %v475, %v478
    %v480 = vpack.c.b16 %v479, %v479
    %vm481 = vcmask 64512
    %v483 = vsel %vm481, %v480, 0
    %vm485 = vcmask 1043456
    %v487 = vsel %vm485, %v175, 0
    %489 = vmatprep.subr.bf16.mxu0 0
    %490 = vmatpush1.bf16.msra.mxu0 %v487
    %491 = vmatprep.subr.bf16.mxu0 0
    %492 = vmatpush1.bf16.msra.mxu0 0
    %493 = vmatprep.subr.bf16.mxu0 0
    %494 = vmatpush1.bf16.msra.mxu0 0
    %495 = vmatprep.subr.bf16.mxu0 0
    %496 = vmatpush1.bf16.msra.mxu0 0
    %497 = vmatprep.subr.bf16.mxu0 0
    %498 = vmatpush1.bf16.msra.mxu0 0
    %499 = vmatprep.subr.bf16.mxu0 0
    %500 = vmatpush1.bf16.msra.mxu0 0
    %501 = vmatprep.subr.bf16.mxu0 0
    %502 = vmatpush1.bf16.msra.mxu0 0
    %503 = vmatprep.subr.bf16.mxu0 0
    %504 = vmatpush1.bf16.msra.mxu0 0
    %505 = vmatprep.subr.bf16.mxu0 0
    %506 = vmatpush1.bf16.msra.mxu0 0
    %507 = vmatprep.subr.bf16.mxu0 0
    %508 = vmatpush1.bf16.msra.mxu0 0
    %509 = vmatprep.subr.bf16.mxu0 0
    %510 = vmatpush1.bf16.msra.mxu0 0
    %511 = vmatprep.subr.bf16.mxu0 0
    %512 = vmatpush1.bf16.msra.mxu0 0
    %513 = vmatprep.subr.bf16.mxu0 0
    %514 = vmatpush1.bf16.msra.mxu0 0
    %515 = vmatprep.subr.bf16.mxu0 0
    %516 = vmatpush1.bf16.msra.mxu0 0
    %517 = vmatprep.subr.bf16.mxu0 0
    %518 = vmatpush1.bf16.msra.mxu0 0
    %519 = vmatprep.subr.bf16.mxu0 0
    %520 = vmatpush1.bf16.msra.mxu0 0
    %521 = vmatprep.mubr.bf16.mxu0 0
    %522 = vmatmul.mubr.bf16.gmra.mrb[0].mxu0 %v483
    %v523 = vpop.f32.mrb[0].mxu0
    %v524 = vadd.f32 0.0, %v523
    %v525 = vpop.f32.mrb[0].mxu0
    %v526 = vpop.f32.mrb[0].mxu0
    %v527 = vpop.f32.mrb[0].mxu0
    %528 = vdwg.mxu0
    %v530 = vunpack.c.l.b16 %v470
    %531 = vset.pattern.permute.xlu0 0
    %532 = vperm.xlu0 %531, %v530
    %v533 = vpop.permute.xlu0 %532
    %v534 = vlaneseq
    %v535 = vshrl.u32 %v534, 7
    %v536 = vsub.s32 %v401, %v535
    %v537 = vrot.slane %v533, %v536
    %v538 = vpack.c.b16 %v537, %v537
    %v540 = vsel %vm481, %v538, 0
    %v543 = vsel %vm485, %v176, 0
    %545 = vmatprep.subr.bf16.mxu0 0
    %546 = vmatpush1.bf16.msra.mxu0 %v543
    %547 = vmatprep.subr.bf16.mxu0 0
    %548 = vmatpush1.bf16.msra.mxu0 0
    %549 = vmatprep.subr.bf16.mxu0 0
    %550 = vmatpush1.bf16.msra.mxu0 0
    %551 = vmatprep.subr.bf16.mxu0 0
    %552 = vmatpush1.bf16.msra.mxu0 0
    %553 = vmatprep.subr.bf16.mxu0 0
    %554 = vmatpush1.bf16.msra.mxu0 0
    %555 = vmatprep.subr.bf16.mxu0 0
    %556 = vmatpush1.bf16.msra.mxu0 0
    %557 = vmatprep.subr.bf16.mxu0 0
    %558 = vmatpush1.bf16.msra.mxu0 0
    %559 = vmatprep.subr.bf16.mxu0 0
    %560 = vmatpush1.bf16.msra.mxu0 0
    %561 = vmatprep.subr.bf16.mxu0 0
    %562 = vmatpush1.bf16.msra.mxu0 0
    %563 = vmatprep.subr.bf16.mxu0 0
    %564 = vmatpush1.bf16.msra.mxu0 0
    %565 = vmatprep.subr.bf16.mxu0 0
    %566 = vmatpush1.bf16.msra.mxu0 0
    %567 = vmatprep.subr.bf16.mxu0 0
    %568 = vmatpush1.bf16.msra.mxu0 0
    %569 = vmatprep.subr.bf16.mxu0 0
    %570 = vmatpush1.bf16.msra.mxu0 0
    %571 = vmatprep.subr.bf16.mxu0 0
    %572 = vmatpush1.bf16.msra.mxu0 0
    %573 = vmatprep.subr.bf16.mxu0 0
    %574 = vmatpush1.bf16.msra.mxu0 0
    %575 = vmatprep.subr.bf16.mxu0 0
    %576 = vmatpush1.bf16.msra.mxu0 0
    %577 = vmatprep.mubr.bf16.mxu0 0
    %578 = vmatmul.mubr.bf16.gmra.mrb[0].mxu0 %v540
    %v579 = vpop.f32.mrb[0].mxu0
    %v580 = vadd.f32 0.0, %v579
    %v581 = vpop.f32.mrb[0].mxu0
    %v582 = vpop.f32.mrb[0].mxu0
    %v583 = vpop.f32.mrb[0].mxu0
    %584 = vdwg.mxu0
    %v585 = vpack.c.bf16 %v524, %v524
    %v586 = vpack.c.bf16 %v580, %v580
    %v587 = vld [vmem:[#allocation11] sm:$0xff]
    %v588 = vld [vmem:[#allocation11 + $0x8] sm:$0xf]
    %v589 = vld [vmem:[#allocation11 + $0xc] sm:$0xff]
    %v590 = vld [vmem:[#allocation11 + $0x14] sm:$0xf]
    %v591 = vld [vmem:[#allocation11 + $0x18] sm:$0xff]
    %v592 = vld [vmem:[#allocation11 + $0x20] sm:$0xf]
    %v593 = vld [vmem:[#allocation11 + $0x24] sm:$0xff]
    %v594 = vld [vmem:[#allocation11 + $0x2c] sm:$0xf]
    %v595 = vld [vmem:[#allocation11 + $0x30] sm:$0xff]
    %v596 = vld [vmem:[#allocation11 + $0x38] sm:$0xf]
    %v597 = vld [vmem:[#allocation11 + $0x3c] sm:$0xff]
    %v598 = vld [vmem:[#allocation11 + $0x44] sm:$0xf]
    %v599 = vld [vmem:[#allocation13] sm:$0xff]
    %v600 = vld [vmem:[#allocation13 + $0x8] sm:$0xf]
    %v601 = vld [vmem:[#allocation13 + $0xc] sm:$0xff]
    %v602 = vld [vmem:[#allocation13 + $0x14] sm:$0xf]
    %v603 = vld [vmem:[#allocation13 + $0x18] sm:$0xff]
    %v604 = vld [vmem:[#allocation13 + $0x20] sm:$0xf]
    %v605 = vld [vmem:[#allocation13 + $0x24] sm:$0xff]
    %v606 = vld [vmem:[#allocation13 + $0x2c] sm:$0xf]
    %v609 = vunpack.c.l.b16 %v585
    %v610 = vunpack.c.l.b16 %v586
    %v611 = vrot.slane %v610, 7
    %v612 = vsel %vm410, %v611, %v609
    %v613 = vpack.c.b16 %v612, %v612
    %v622 = vunpack.c.l.b16 %v599
    %v623 = vunpack.c.h.b16 %v599
    %v624 = vunpack.c.l.b16 %v600
    %v625 = vunpack.c.l.b16 %v601
    %v626 = vunpack.c.h.b16 %v601
    %v627 = vunpack.c.l.b16 %v602
    %v628 = vunpack.c.l.b16 %v603
    %v629 = vunpack.c.h.b16 %v603
    %v630 = vunpack.c.l.b16 %v604
    %v631 = vunpack.c.l.b16 %v605
    %v632 = vunpack.c.h.b16 %v605
    %v633 = vunpack.c.l.b16 %v606
    %v634 = vpack.c.b16 %v625, %v622
    %v635 = vpack.c.b16 %v626, %v623
    %v636 = vpack.c.b16 %v627, %v624
    %v637 = vpack.c.b16 %v631, %v628
    %v638 = vpack.c.b16 %v632, %v629
    %v639 = vpack.c.b16 %v633, %v630
    %v647 = vsel %vm303, %v613, 0
    %649 = vmatprep.subr.bf16.mxu0 %v635
    %650 = vmatpush1.bf16.msra.mxu0 %v634
    %651 = vmatprep.subr.bf16.mxu0 %v638
    %652 = vmatpush1.bf16.msra.mxu0 %v637
    %653 = vmatprep.subr.bf16.mxu0 0
    %654 = vmatpush1.bf16.msra.mxu0 0
    %655 = vmatprep.subr.bf16.mxu0 0
    %656 = vmatpush1.bf16.msra.mxu0 0
    %657 = vmatprep.subr.bf16.mxu0 0
    %658 = vmatpush1.bf16.msra.mxu0 0
    %659 = vmatprep.subr.bf16.mxu0 0
    %660 = vmatpush1.bf16.msra.mxu0 0
    %661 = vmatprep.subr.bf16.mxu0 0
    %662 = vmatpush1.bf16.msra.mxu0 0
    %663 = vmatprep.subr.bf16.mxu0 0
    %664 = vmatpush1.bf16.msra.mxu0 0
    %665 = vmatprep.subr.bf16.mxu0 0
    %666 = vmatpush1.bf16.msra.mxu0 0
    %667 = vmatprep.subr.bf16.mxu0 0
    %668 = vmatpush1.bf16.msra.mxu0 0
    %669 = vmatprep.subr.bf16.mxu0 0
    %670 = vmatpush1.bf16.msra.mxu0 0
    %671 = vmatprep.subr.bf16.mxu0 0
    %672 = vmatpush1.bf16.msra.mxu0 0
    %673 = vmatprep.subr.bf16.mxu0 0
    %674 = vmatpush1.bf16.msra.mxu0 0
    %675 = vmatprep.subr.bf16.mxu0 0
    %676 = vmatpush1.bf16.msra.mxu0 0
    %677 = vmatprep.subr.bf16.mxu0 0
    %678 = vmatpush1.bf16.msra.mxu0 0
    %679 = vmatprep.subr.bf16.mxu0 0
    %680 = vmatpush1.bf16.msra.mxu0 0
    %681 = vmatprep.mubr.bf16.mxu0 0
    %682 = vmatmul.mubr.bf16.gmra.mrb[0].mxu0 %v647
    %v683 = vpop.f32.mrb[0].mxu0
    %v684 = vadd.f32 0.0, %v683
    %v685 = vpop.f32.mrb[0].mxu0
    %v686 = vadd.f32 0.0, %v685
    %v687 = vpop.f32.mrb[0].mxu0
    %v688 = vpop.f32.mrb[0].mxu0
    %689 = vdwg.mxu0
    %690 = vmatprep.subr.bf16.mxu0 0
    %691 = vmatpush1.bf16.msra.mxu0 %v636
    %692 = vmatprep.subr.bf16.mxu0 0
    %693 = vmatpush1.bf16.msra.mxu0 %v639
    %694 = vmatprep.subr.bf16.mxu0 0
    %695 = vmatpush1.bf16.msra.mxu0 0
    %696 = vmatprep.subr.bf16.mxu0 0
    %697 = vmatpush1.bf16.msra.mxu0 0
    %698 = vmatprep.subr.bf16.mxu0 0
    %699 = vmatpush1.bf16.msra.mxu0 0
    %700 = vmatprep.subr.bf16.mxu0 0
    %701 = vmatpush1.bf16.msra.mxu0 0
    %702 = vmatprep.subr.bf16.mxu0 0
    %703 = vmatpush1.bf16.msra.mxu0 0
    %704 = vmatprep.subr.bf16.mxu0 0
    %705 = vmatpush1.bf16.msra.mxu0 0
    %706 = vmatprep.subr.bf16.mxu0 0
    %707 = vmatpush1.bf16.msra.mxu0 0
    %708 = vmatprep.subr.bf16.mxu0 0
    %709 = vmatpush1.bf16.msra.mxu0 0
    %710 = vmatprep.subr.bf16.mxu0 0
    %711 = vmatpush1.bf16.msra.mxu0 0
    %712 = vmatprep.subr.bf16.mxu0 0
    %713 = vmatpush1.bf16.msra.mxu0 0
    %714 = vmatprep.subr.bf16.mxu0 0
    %715 = vmatpush1.bf16.msra.mxu0 0
    %716 = vmatprep.subr.bf16.mxu0 0
    %717 = vmatpush1.bf16.msra.mxu0 0
    %718 = vmatprep.subr.bf16.mxu0 0
    %719 = vmatpush1.bf16.msra.mxu0 0
    %720 = vmatprep.subr.bf16.mxu0 0
    %721 = vmatpush1.bf16.msra.mxu0 0
    %722 = vmatprep.mubr.bf16.mxu0 0
    %723 = vmatmul.mubr.bf16.gmra.mrb[0].mxu0 %v647
    %v724 = vpop.f32.mrb[0].mxu0
    %v725 = vadd.f32 0.0, %v724
    %v726 = vpop.f32.mrb[0].mxu0
    %v727 = vpop.f32.mrb[0].mxu0
    %v728 = vpop.f32.mrb[0].mxu0
    %729 = vdwg.mxu0
    %v742 = vunpack.c.l.b16 %v587
    %v743 = vunpack.c.h.b16 %v587
    %v744 = vunpack.c.l.b16 %v588
    %v745 = vunpack.c.l.b16 %v589
    %v746 = vunpack.c.h.b16 %v589
    %v747 = vunpack.c.l.b16 %v590
    %v748 = vunpack.c.l.b16 %v591
    %v749 = vunpack.c.h.b16 %v591
    %v750 = vunpack.c.l.b16 %v592
    %v751 = vunpack.c.l.b16 %v593
    %v752 = vunpack.c.h.b16 %v593
    %v753 = vunpack.c.l.b16 %v594
    %v754 = vunpack.c.l.b16 %v595
    %v755 = vunpack.c.h.b16 %v595
    %v756 = vunpack.c.l.b16 %v596
    %v757 = vunpack.c.l.b16 %v597
    %v758 = vunpack.c.h.b16 %v597
    %v759 = vunpack.c.l.b16 %v598
    %v760 = vpack.c.b16 %v745, %v742
    %v761 = vpack.c.b16 %v746, %v743
    %v762 = vpack.c.b16 %v747, %v744
    %v763 = vpack.c.b16 %v751, %v748
    %v764 = vpack.c.b16 %v752, %v749
    %v765 = vpack.c.b16 %v753, %v750
    %v766 = vpack.c.b16 %v757, %v754
    %v767 = vpack.c.b16 %v758, %v755
    %v768 = vpack.c.b16 %v759, %v756
    %vm778 = vcmask 392192
    %v780 = vsel %vm778, %v173, 0
    %782 = vmatprep.subr.bf16.mxu0 %v761
    %783 = vmatpush1.bf16.msra.mxu0 %v760
    %784 = vmatprep.subr.bf16.mxu0 %v764
    %785 = vmatpush1.bf16.msra.mxu0 %v763
    %786 = vmatprep.subr.bf16.mxu0 %v767
    %787 = vmatpush1.bf16.msra.mxu0 %v766
    %788 = vmatprep.subr.bf16.mxu0 0
    %789 = vmatpush1.bf16.msra.mxu0 0
    %790 = vmatprep.subr.bf16.mxu0 0
    %791 = vmatpush1.bf16.msra.mxu0 0
    %792 = vmatprep.subr.bf16.mxu0 0
    %793 = vmatpush1.bf16.msra.mxu0 0
    %794 = vmatprep.subr.bf16.mxu0 0
    %795 = vmatpush1.bf16.msra.mxu0 0
    %796 = vmatprep.subr.bf16.mxu0 0
    %797 = vmatpush1.bf16.msra.mxu0 0
    %798 = vmatprep.subr.bf16.mxu0 0
    %799 = vmatpush1.bf16.msra.mxu0 0
    %800 = vmatprep.subr.bf16.mxu0 0
    %801 = vmatpush1.bf16.msra.mxu0 0
    %802 = vmatprep.subr.bf16.mxu0 0
    %803 = vmatpush1.bf16.msra.mxu0 0
    %804 = vmatprep.subr.bf16.mxu0 0
    %805 = vmatpush1.bf16.msra.mxu0 0
    %806 = vmatprep.subr.bf16.mxu0 0
    %807 = vmatpush1.bf16.msra.mxu0 0
    %808 = vmatprep.subr.bf16.mxu0 0
    %809 = vmatpush1.bf16.msra.mxu0 0
    %810 = vmatprep.subr.bf16.mxu0 0
    %811 = vmatpush1.bf16.msra.mxu0 0
    %812 = vmatprep.subr.bf16.mxu0 0
    %813 = vmatpush1.bf16.msra.mxu0 0
    %814 = vmatprep.mubr.bf16.mxu0 0
    %815 = vmatmul.mubr.bf16.gmra.mrb[0].mxu0 %v780
    %v816 = vpop.f32.mrb[0].mxu0
    %v817 = vadd.f32 %v684, %v816
    %v818 = vpop.f32.mrb[0].mxu0
    %v819 = vadd.f32 %v686, %v818
    %v820 = vpop.f32.mrb[0].mxu0
    %v821 = vpop.f32.mrb[0].mxu0
    %822 = vdwg.mxu0
    %823 = vmatprep.subr.bf16.mxu0 0
    %824 = vmatpush1.bf16.msra.mxu0 %v762
    %825 = vmatprep.subr.bf16.mxu0 0
    %826 = vmatpush1.bf16.msra.mxu0 %v765
    %827 = vmatprep.subr.bf16.mxu0 0
    %828 = vmatpush1.bf16.msra.mxu0 %v768
    %829 = vmatprep.subr.bf16.mxu0 0
    %830 = vmatpush1.bf16.msra.mxu0 0
    %831 = vmatprep.subr.bf16.mxu0 0
    %832 = vmatpush1.bf16.msra.mxu0 0
    %833 = vmatprep.subr.bf16.mxu0 0
    %834 = vmatpush1.bf16.msra.mxu0 0
    %835 = vmatprep.subr.bf16.mxu0 0
    %836 = vmatpush1.bf16.msra.mxu0 0
    %837 = vmatprep.subr.bf16.mxu0 0
    %838 = vmatpush1.bf16.msra.mxu0 0
    %839 = vmatprep.subr.bf16.mxu0 0
    %840 = vmatpush1.bf16.msra.mxu0 0
    %841 = vmatprep.subr.bf16.mxu0 0
    %842 = vmatpush1.bf16.msra.mxu0 0
    %843 = vmatprep.subr.bf16.mxu0 0
    %844 = vmatpush1.bf16.msra.mxu0 0
    %845 = vmatprep.subr.bf16.mxu0 0
    %846 = vmatpush1.bf16.msra.mxu0 0
    %847 = vmatprep.subr.bf16.mxu0 0
    %848 = vmatpush1.bf16.msra.mxu0 0
    %849 = vmatprep.subr.bf16.mxu0 0
    %850 = vmatpush1.bf16.msra.mxu0 0
    %851 = vmatprep.subr.bf16.mxu0 0
    %852 = vmatpush1.bf16.msra.mxu0 0
    %853 = vmatprep.subr.bf16.mxu0 0
    %854 = vmatpush1.bf16.msra.mxu0 0
    %855 = vmatprep.mubr.bf16.mxu0 0
    %856 = vmatmul.mubr.bf16.gmra.mrb[0].mxu0 %v780
    %v857 = vpop.f32.mrb[0].mxu0
    %v858 = vadd.f32 %v725, %v857
    %v859 = vpop.f32.mrb[0].mxu0
    %v860 = vpop.f32.mrb[0].mxu0
    %v861 = vpop.f32.mrb[0].mxu0
    %862 = vdwg.mxu0
    %v863 = vld [vmem:[%s9] sm:$0x7]
    %v865 = vlaneseq
    %v866 = vshrl.u32 %v865, 7
    %v867 = vsub.s32 0, %v866
    %v868 = vrot.slane %v863, %v867
    %v869 = vlaneseq
    %v870 = vshrl.u32 %v869, 7
    %v871 = vsub.s32 1, %v870
    %v872 = vrot.slane %v863, %v871
    %v873 = vlaneseq
    %v874 = vshrl.u32 %v873, 7
    %v875 = vsub.s32 2, %v874
    %v876 = vrot.slane %v863, %v875
    %v880 = vadd.f32 %v817, %v868
    %v881 = vadd.f32 %v819, %v872
    %v882 = vadd.f32 %v858, %v876
    %v883 = vld [vmem:[#allocation14] sm:$0xff]
    %v884 = vld [vmem:[#allocation14 + $0x8] sm:$0xf]
    %v885 = vld [vmem:[#allocation14 + $0xc] sm:$0xff]
    %v886 = vld [vmem:[#allocation14 + $0x14] sm:$0xf]
    %v887 = vld [vmem:[#allocation14 + $0x18] sm:$0xff]
    %v888 = vld [vmem:[#allocation14 + $0x20] sm:$0xf]
    %v889 = vld [vmem:[#allocation14 + $0x24] sm:$0xff]
    %v890 = vld [vmem:[#allocation14 + $0x2c] sm:$0xf]
    %v891 = vld [vmem:[#allocation14 + $0x30] sm:$0xff]
    %v892 = vld [vmem:[#allocation14 + $0x38] sm:$0xf]
    %v893 = vld [vmem:[#allocation14 + $0x3c] sm:$0xff]
    %v894 = vld [vmem:[#allocation14 + $0x44] sm:$0xf]
    %v895 = vld [vmem:[#allocation14 + $0x48] sm:$0xff]
    %v896 = vld [vmem:[#allocation14 + $0x50] sm:$0xf]
    %v897 = vld [vmem:[#allocation14 + $0x54] sm:$0xff]
    %v898 = vld [vmem:[#allocation14 + $0x5c] sm:$0xf]
    %v899 = vld [vmem:[#allocation14 + $0x60] sm:$0xff]
    %v900 = vld [vmem:[#allocation14 + $0x68] sm:$0xf]
    %v901 = vld [vmem:[#allocation14 + $0x6c] sm:$0xff]
    %v902 = vld [vmem:[#allocation14 + $0x74] sm:$0xf]
    %v903 = vld [vmem:[#allocation14 + $0x78] sm:$0xff]
    %v904 = vld [vmem:[#allocation14 + $0x80] sm:$0xf]
    %v905 = vld [vmem:[#allocation14 + $0x84] sm:$0xff]
    %v906 = vld [vmem:[#allocation14 + $0x8c] sm:$0xf]
    %v907 = vld [vmem:[#allocation14 + $0x90] sm:$0xff]
    %v908 = vld [vmem:[#allocation14 + $0x98] sm:$0xf]
    %v909 = vld [vmem:[#allocation14 + $0x9c] sm:$0xff]
    %v910 = vld [vmem:[#allocation14 + $0xa4] sm:$0xf]
    %v911 = vld [vmem:[#allocation14 + $0xa8] sm:$0xff]
    %v912 = vld [vmem:[#allocation14 + $0xb0] sm:$0xf]
    %v913 = vld [vmem:[#allocation14 + $0xb4] sm:$0xff]
    %v914 = vld [vmem:[#allocation14 + $0xbc] sm:$0xf]
    %v915 = vld [vmem:[%s10] sm:$0x7]
    %v917 = vlaneseq
    %v918 = vshrl.u32 %v917, 7
    %v919 = vsub.s32 0, %v918
    %v920 = vrot.slane %v915, %v919
    %v921 = vlaneseq
    %v922 = vshrl.u32 %v921, 7
    %v923 = vsub.s32 1, %v922
    %v924 = vrot.slane %v915, %v923
    %v925 = vlaneseq
    %v926 = vshrl.u32 %v925, 7
    %v927 = vsub.s32 2, %v926
    %v928 = vrot.slane %v915, %v927
    %v964 = vunpack.c.l.b16 %v883
    %v965 = vunpack.c.h.b16 %v883
    %v966 = vunpack.c.l.b16 %v884
    %v967 = vunpack.c.l.b16 %v885
    %v968 = vunpack.c.h.b16 %v885
    %v969 = vunpack.c.l.b16 %v886
    %v970 = vunpack.c.l.b16 %v887
    %v971 = vunpack.c.h.b16 %v887
    %v972 = vunpack.c.l.b16 %v888
    %v973 = vunpack.c.l.b16 %v889
    %v974 = vunpack.c.h.b16 %v889
    %v975 = vunpack.c.l.b16 %v890
    %v976 = vunpack.c.l.b16 %v891
    %v977 = vunpack.c.h.b16 %v891
    %v978 = vunpack.c.l.b16 %v892
    %v979 = vunpack.c.l.b16 %v893
    %v980 = vunpack.c.h.b16 %v893
    %v981 = vunpack.c.l.b16 %v894
    %v982 = vunpack.c.l.b16 %v895
    %v983 = vunpack.c.h.b16 %v895
    %v984 = vunpack.c.l.b16 %v896
    %v985 = vunpack.c.l.b16 %v897
    %v986 = vunpack.c.h.b16 %v897
    %v987 = vunpack.c.l.b16 %v898
    %v988 = vunpack.c.l.b16 %v899
    %v989 = vunpack.c.h.b16 %v899
    %v990 = vunpack.c.l.b16 %v900
    %v991 = vunpack.c.l.b16 %v901
    %v992 = vunpack.c.h.b16 %v901
    %v993 = vunpack.c.l.b16 %v902
    %v994 = vunpack.c.l.b16 %v903
    %v995 = vunpack.c.h.b16 %v903
    %v996 = vunpack.c.l.b16 %v904
    %v997 = vunpack.c.l.b16 %v905
    %v998 = vunpack.c.h.b16 %v905
    %v999 = vunpack.c.l.b16 %v906
    %v1000 = vunpack.c.l.b16 %v907
    %v1001 = vunpack.c.h.b16 %v907
    %v1002 = vunpack.c.l.b16 %v908
    %v1003 = vunpack.c.l.b16 %v909
    %v1004 = vunpack.c.h.b16 %v909
    %v1005 = vunpack.c.l.b16 %v910
    %v1006 = vunpack.c.l.b16 %v911
    %v1007 = vunpack.c.h.b16 %v911
    %v1008 = vunpack.c.l.b16 %v912
    %v1009 = vunpack.c.l.b16 %v913
    %v1010 = vunpack.c.h.b16 %v913
    %v1011 = vunpack.c.l.b16 %v914
    %v1012 = vpack.c.b16 %v967, %v964
    %v1013 = vpack.c.b16 %v968, %v965
    %v1014 = vpack.c.b16 %v969, %v966
    %v1015 = vpack.c.b16 %v973, %v970
    %v1016 = vpack.c.b16 %v974, %v971
    %v1017 = vpack.c.b16 %v975, %v972
    %v1018 = vpack.c.b16 %v979, %v976
    %v1019 = vpack.c.b16 %v980, %v977
    %v1020 = vpack.c.b16 %v981, %v978
    %v1021 = vpack.c.b16 %v985, %v982
    %v1022 = vpack.c.b16 %v986, %v983
    %v1023 = vpack.c.b16 %v987, %v984
    %v1024 = vpack.c.b16 %v991, %v988
    %v1025 = vpack.c.b16 %v992, %v989
    %v1026 = vpack.c.b16 %v993, %v990
    %v1027 = vpack.c.b16 %v997, %v994
    %v1028 = vpack.c.b16 %v998, %v995
    %v1029 = vpack.c.b16 %v999, %v996
    %v1030 = vpack.c.b16 %v1003, %v1000
    %v1031 = vpack.c.b16 %v1004, %v1001
    %v1032 = vpack.c.b16 %v1005, %v1002
    %v1033 = vpack.c.b16 %v1009, %v1006
    %v1034 = vpack.c.b16 %v1010, %v1007
    %v1035 = vpack.c.b16 %v1011, %v1008
    %1060 = vmatprep.subr.bf16.mxu0 %v1013
    %1061 = vmatpush1.bf16.msra.mxu0 %v1012
    %1062 = vmatprep.subr.bf16.mxu0 %v1016
    %1063 = vmatpush1.bf16.msra.mxu0 %v1015
    %1064 = vmatprep.subr.bf16.mxu0 %v1019
    %1065 = vmatpush1.bf16.msra.mxu0 %v1018
    %1066 = vmatprep.subr.bf16.mxu0 %v1022
    %1067 = vmatpush1.bf16.msra.mxu0 %v1021
    %1068 = vmatprep.subr.bf16.mxu0 %v1025
    %1069 = vmatpush1.bf16.msra.mxu0 %v1024
    %1070 = vmatprep.subr.bf16.mxu0 %v1028
    %1071 = vmatpush1.bf16.msra.mxu0 %v1027
    %1072 = vmatprep.subr.bf16.mxu0 %v1031
    %1073 = vmatpush1.bf16.msra.mxu0 %v1030
    %1074 = vmatprep.subr.bf16.mxu0 %v1034
    %1075 = vmatpush1.bf16.msra.mxu0 %v1033
    %1076 = vmatprep.subr.bf16.mxu0 0
    %1077 = vmatpush1.bf16.msra.mxu0 0
    %1078 = vmatprep.subr.bf16.mxu0 0
    %1079 = vmatpush1.bf16.msra.mxu0 0
    %1080 = vmatprep.subr.bf16.mxu0 0
    %1081 = vmatpush1.bf16.msra.mxu0 0
    %1082 = vmatprep.subr.bf16.mxu0 0
    %1083 = vmatpush1.bf16.msra.mxu0 0
    %1084 = vmatprep.subr.bf16.mxu0 0
    %1085 = vmatpush1.bf16.msra.mxu0 0
    %1086 = vmatprep.subr.bf16.mxu0 0
    %1087 = vmatpush1.bf16.msra.mxu0 0
    %1088 = vmatprep.subr.bf16.mxu0 0
    %1089 = vmatpush1.bf16.msra.mxu0 0
    %1090 = vmatprep.subr.bf16.mxu0 0
    %1091 = vmatpush1.bf16.msra.mxu0 0
    %1092 = vmatprep.mubr.bf16.mxu0 0
    %1093 = vmatmul.mubr.bf16.gmra.mrb[0].mxu0 %v177
    %v1094 = vpop.f32.mrb[0].mxu0
    %v1095 = vadd.f32 %v920, %v1094
    %v1096 = vpop.f32.mrb[0].mxu0
    %v1097 = vadd.f32 %v924, %v1096
    %v1098 = vpop.f32.mrb[0].mxu0
    %v1099 = vpop.f32.mrb[0].mxu0
    %1100 = vdwg.mxu0
    %1101 = vmatprep.subr.bf16.mxu0 0
    %1102 = vmatpush1.bf16.msra.mxu0 %v1014
    %1103 = vmatprep.subr.bf16.mxu0 0
    %1104 = vmatpush1.bf16.msra.mxu0 %v1017
    %1105 = vmatprep.subr.bf16.mxu0 0
    %1106 = vmatpush1.bf16.msra.mxu0 %v1020
    %1107 = vmatprep.subr.bf16.mxu0 0
    %1108 = vmatpush1.bf16.msra.mxu0 %v1023
    %1109 = vmatprep.subr.bf16.mxu0 0
    %1110 = vmatpush1.bf16.msra.mxu0 %v1026
    %1111 = vmatprep.subr.bf16.mxu0 0
    %1112 = vmatpush1.bf16.msra.mxu0 %v1029
    %1113 = vmatprep.subr.bf16.mxu0 0
    %1114 = vmatpush1.bf16.msra.mxu0 %v1032
    %1115 = vmatprep.subr.bf16.mxu0 0
    %1116 = vmatpush1.bf16.msra.mxu0 %v1035
    %1117 = vmatprep.subr.bf16.mxu0 0
    %1118 = vmatpush1.bf16.msra.mxu0 0
    %1119 = vmatprep.subr.bf16.mxu0 0
    %1120 = vmatpush1.bf16.msra.mxu0 0
    %1121 = vmatprep.subr.bf16.mxu0 0
    %1122 = vmatpush1.bf16.msra.mxu0 0
    %1123 = vmatprep.subr.bf16.mxu0 0
    %1124 = vmatpush1.bf16.msra.mxu0 0
    %1125 = vmatprep.subr.bf16.mxu0 0
    %1126 = vmatpush1.bf16.msra.mxu0 0
    %1127 = vmatprep.subr.bf16.mxu0 0
    %1128 = vmatpush1.bf16.msra.mxu0 0
    %1129 = vmatprep.subr.bf16.mxu0 0
    %1130 = vmatpush1.bf16.msra.mxu0 0
    %1131 = vmatprep.subr.bf16.mxu0 0
    %1132 = vmatpush1.bf16.msra.mxu0 0
    %1133 = vmatprep.mubr.bf16.mxu0 0
    %1134 = vmatmul.mubr.bf16.gmra.mrb[0].mxu0 %v177
    %v1135 = vpop.f32.mrb[0].mxu0
    %v1136 = vadd.f32 %v928, %v1135
    %v1137 = vpop.f32.mrb[0].mxu0
    %v1138 = vpop.f32.mrb[0].mxu0
    %v1139 = vpop.f32.mrb[0].mxu0
    %1140 = vdwg.mxu0
    %v1141 = vadd.f32 %v880, %v1095
    %v1142 = vxor.u32 %v1141, 2147483648
    %v1143 = vmul.f32 %v1142, 1.442695
    %v1144 = vpow.pop %v1143
    %v1145 = vadd.f32 %v1144, 1.0
    %v1146 = vrcp.pop %v1145
    %v1147 = vmul.f32 1.0, %v1146
    %v1148 = vadd.f32 %v881, %v1097
    %v1149 = vxor.u32 %v1148, 2147483648
    %v1150 = vmul.f32 %v1149, 1.442695
    %v1151 = vpow.pop %v1150
    %v1152 = vadd.f32 %v1151, 1.0
    %v1153 = vrcp.pop %v1152
    %v1154 = vmul.f32 1.0, %v1153
    %v1155 = vmul.f32 %v1147, %v1136
    %v1156 = vadd.f32 %v882, %v1155
    %v1157 = vtanh.pop %v1156
    %v1158 = vsub.f32 1.0, %v1154
    %v1159 = vmul.f32 %v1158, %v1157
    %v1160 = vmul.f32 %v1154, %v174
    %v1161 = vadd.f32 %v1159, %v1160
    %v1162 = vpack.c.bf16 %v1161, %v1161
    %v1163 = vld [vmem:[#allocation16] sm:$0xf]
    %v1164 = vld [vmem:[#allocation16 + $0x4] sm:$0xf]
    %v1165 = vld [vmem:[#allocation16 + $0x8] sm:$0xf]
    %v1166 = vld [vmem:[#allocation16 + $0xc] sm:$0xf]
    %v1167 = vld [vmem:[#allocation16 + $0x10] sm:$0xf]
    %v1168 = vld [vmem:[#allocation16 + $0x14] sm:$0xf]
    %v1169 = vld [vmem:[#allocation16 + $0x18] sm:$0xf]
    %v1170 = vld [vmem:[#allocation16 + $0x1c] sm:$0xf]
    %v1171 = vld [vmem:[#allocation16 + $0x20] sm:$0xf]
    %v1172 = vld [vmem:[#allocation16 + $0x24] sm:$0xf]
    %v1173 = vld [vmem:[#allocation16 + $0x28] sm:$0xf]
    %v1174 = vld [vmem:[#allocation16 + $0x2c] sm:$0xf]
    %v1175 = vld [vmem:[#allocation16 + $0x30] sm:$0xf]
    %v1176 = vld [vmem:[#allocation16 + $0x34] sm:$0xf]
    %v1177 = vld [vmem:[#allocation16 + $0x38] sm:$0xf]
    %v1178 = vld [vmem:[#allocation16 + $0x3c] sm:$0xf]
    %v1179 = vld [vmem:[%s12] sm:$0xf]
    %v1180 = vld [vmem:[%s12 + $0x4] sm:$0xf]
    %v1181 = vld [vmem:[%s12 + $0x8] sm:$0xf]
    %v1182 = vld [vmem:[%s12 + $0xc] sm:$0xf]
    %v1187 = vunpack.c.l.b16 %v1179
    %v1188 = vunpack.c.l.b16 %v1180
    %v1189 = vunpack.c.l.b16 %v1181
    %v1190 = vunpack.c.l.b16 %v1182
    %v1191 = vpack.c.b16 %v1188, %v1187
    %v1192 = vpack.c.b16 %v1190, %v1189
    %1195 = vmatprep.subr.bf16.mxu0 0
    %1196 = vmatpush1.bf16.msra.mxu0 %v1191
    %1197 = vmatprep.subr.bf16.mxu0 0
    %1198 = vmatpush1.bf16.msra.mxu0 %v1192
    %1199 = vmatprep.subr.bf16.mxu0 0
    %1200 = vmatpush1.bf16.msra.mxu0 0
    %1201 = vmatprep.subr.bf16.mxu0 0
    %1202 = vmatpush1.bf16.msra.mxu0 0
    %1203 = vmatprep.subr.bf16.mxu0 0
    %1204 = vmatpush1.bf16.msra.mxu0 0
    %1205 = vmatprep.subr.bf16.mxu0 0
    %1206 = vmatpush1.bf16.msra.mxu0 0
    %1207 = vmatprep.subr.bf16.mxu0 0
    %1208 = vmatpush1.bf16.msra.mxu0 0
    %1209 = vmatprep.subr.bf16.mxu0 0
    %1210 = vmatpush1.bf16.msra.mxu0 0
    %1211 = vmatprep.subr.bf16.mxu0 0
    %1212 = vmatpush1.bf16.msra.mxu0 0
    %1213 = vmatprep.subr.bf16.mxu0 0
    %1214 = vmatpush1.bf16.msra.mxu0 0
    %1215 = vmatprep.subr.bf16.mxu0 0
    %1216 = vmatpush1.bf16.msra.mxu0 0
    %1217 = vmatprep.subr.bf16.mxu0 0
    %1218 = vmatpush1.bf16.msra.mxu0 0
    %1219 = vmatprep.subr.bf16.mxu0 0
    %1220 = vmatpush1.bf16.msra.mxu0 0
    %1221 = vmatprep.subr.bf16.mxu0 0
    %1222 = vmatpush1.bf16.msra.mxu0 0
    %1223 = vmatprep.subr.bf16.mxu0 0
    %1224 = vmatpush1.bf16.msra.mxu0 0
    %1225 = vmatprep.subr.bf16.mxu0 0
    %1226 = vmatpush1.bf16.msra.mxu0 0
    %1227 = vmatprep.mubr.bf16.mxu0 0
    %1228 = vmatmul.mubr.bf16.gmra.mrb[0].mxu0 %v647
    %v1229 = vpop.f32.mrb[0].mxu0
    %v1230 = vadd.f32 0.0, %v1229
    %v1231 = vpop.f32.mrb[0].mxu0
    %v1232 = vpop.f32.mrb[0].mxu0
    %v1233 = vpop.f32.mrb[0].mxu0
    %1234 = vdwg.mxu0
    %v1251 = vunpack.c.l.b16 %v1163
    %v1252 = vunpack.c.l.b16 %v1164
    %v1253 = vunpack.c.l.b16 %v1165
    %v1254 = vunpack.c.l.b16 %v1166
    %v1255 = vunpack.c.l.b16 %v1167
    %v1256 = vunpack.c.l.b16 %v1168
    %v1257 = vunpack.c.l.b16 %v1169
    %v1258 = vunpack.c.l.b16 %v1170
    %v1259 = vunpack.c.l.b16 %v1171
    %v1260 = vunpack.c.l.b16 %v1172
    %v1261 = vunpack.c.l.b16 %v1173
    %v1262 = vunpack.c.l.b16 %v1174
    %v1263 = vunpack.c.l.b16 %v1175
    %v1264 = vunpack.c.l.b16 %v1176
    %v1265 = vunpack.c.l.b16 %v1177
    %v1266 = vunpack.c.l.b16 %v1178
    %v1267 = vpack.c.b16 %v1252, %v1251
    %v1268 = vpack.c.b16 %v1254, %v1253
    %v1269 = vpack.c.b16 %v1256, %v1255
    %v1270 = vpack.c.b16 %v1258, %v1257
    %v1271 = vpack.c.b16 %v1260, %v1259
    %v1272 = vpack.c.b16 %v1262, %v1261
    %v1273 = vpack.c.b16 %v1264, %v1263
    %v1274 = vpack.c.b16 %v1266, %v1265
    %1283 = vmatprep.subr.bf16.mxu0 0
    %1284 = vmatpush1.bf16.msra.mxu0 %v1267
    %1285 = vmatprep.subr.bf16.mxu0 0
    %1286 = vmatpush1.bf16.msra.mxu0 %v1268
    %1287 = vmatprep.subr.bf16.mxu0 0
    %1288 = vmatpush1.bf16.msra.mxu0 %v1269
    %1289 = vmatprep.subr.bf16.mxu0 0
    %1290 = vmatpush1.bf16.msra.mxu0 %v1270
    %1291 = vmatprep.subr.bf16.mxu0 0
    %1292 = vmatpush1.bf16.msra.mxu0 %v1271
    %1293 = vmatprep.subr.bf16.mxu0 0
    %1294 = vmatpush1.bf16.msra.mxu0 %v1272
    %1295 = vmatprep.subr.bf16.mxu0 0
    %1296 = vmatpush1.bf16.msra.mxu0 %v1273
    %1297 = vmatprep.subr.bf16.mxu0 0
    %1298 = vmatpush1.bf16.msra.mxu0 %v1274
    %1299 = vmatprep.subr.bf16.mxu0 0
    %1300 = vmatpush1.bf16.msra.mxu0 0
    %1301 = vmatprep.subr.bf16.mxu0 0
    %1302 = vmatpush1.bf16.msra.mxu0 0
    %1303 = vmatprep.subr.bf16.mxu0 0
    %1304 = vmatpush1.bf16.msra.mxu0 0
    %1305 = vmatprep.subr.bf16.mxu0 0
    %1306 = vmatpush1.bf16.msra.mxu0 0
    %1307 = vmatprep.subr.bf16.mxu0 0
    %1308 = vmatpush1.bf16.msra.mxu0 0
    %1309 = vmatprep.subr.bf16.mxu0 0
    %1310 = vmatpush1.bf16.msra.mxu0 0
    %1311 = vmatprep.subr.bf16.mxu0 0
    %1312 = vmatpush1.bf16.msra.mxu0 0
    %1313 = vmatprep.subr.bf16.mxu0 0
    %1314 = vmatpush1.bf16.msra.mxu0 0
    %1315 = vmatprep.mubr.bf16.mxu0 0
    %1316 = vmatmul.mubr.bf16.gmra.mrb[0].mxu0 %v1162
    %v1317 = vpop.f32.mrb[0].mxu0
    %v1318 = vadd.f32 %v1230, %v1317
    %v1319 = vpop.f32.mrb[0].mxu0
    %v1320 = vpop.f32.mrb[0].mxu0
    %v1321 = vpop.f32.mrb[0].mxu0
    %1322 = vdwg.mxu0
    %v1323 = vld [vmem:[%s13] sm:$0xf]
    %v1324 = vld [vmem:[%s13 + $0x4] sm:$0xf]
    %v1325 = vld [vmem:[%s13 + $0x8] sm:$0xf]
    %v1326 = vld [vmem:[%s13 + $0xc] sm:$0xf]
    %v1327 = vld [vmem:[%s13 + $0x10] sm:$0xf]
    %v1328 = vld [vmem:[%s13 + $0x14] sm:$0xf]
    %v1335 = vunpack.c.l.b16 %v1323
    %v1336 = vunpack.c.l.b16 %v1324
    %v1337 = vunpack.c.l.b16 %v1325
    %v1338 = vunpack.c.l.b16 %v1326
    %v1339 = vunpack.c.l.b16 %v1327
    %v1340 = vunpack.c.l.b16 %v1328
    %v1341 = vpack.c.b16 %v1336, %v1335
    %v1342 = vpack.c.b16 %v1338, %v1337
    %v1343 = vpack.c.b16 %v1340, %v1339
    %1347 = vmatprep.subr.bf16.mxu0 0
    %1348 = vmatpush1.bf16.msra.mxu0 %v1341
    %1349 = vmatprep.subr.bf16.mxu0 0
    %1350 = vmatpush1.bf16.msra.mxu0 %v1342
    %1351 = vmatprep.subr.bf16.mxu0 0
    %1352 = vmatpush1.bf16.msra.mxu0 %v1343
    %1353 = vmatprep.subr.bf16.mxu0 0
    %1354 = vmatpush1.bf16.msra.mxu0 0
    %1355 = vmatprep.subr.bf16.mxu0 0
    %1356 = vmatpush1.bf16.msra.mxu0 0
    %1357 = vmatprep.subr.bf16.mxu0 0
    %1358 = vmatpush1.bf16.msra.mxu0 0
    %1359 = vmatprep.subr.bf16.mxu0 0
    %1360 = vmatpush1.bf16.msra.mxu0 0
    %1361 = vmatprep.subr.bf16.mxu0 0
    %1362 = vmatpush1.bf16.msra.mxu0 0
    %1363 = vmatprep.subr.bf16.mxu0 0
    %1364 = vmatpush1.bf16.msra.mxu0 0
    %1365 = vmatprep.subr.bf16.mxu0 0
    %1366 = vmatpush1.bf16.msra.mxu0 0
    %1367 = vmatprep.subr.bf16.mxu0 0
    %1368 = vmatpush1.bf16.msra.mxu0 0
    %1369 = vmatprep.subr.bf16.mxu0 0
    %1370 = vmatpush1.bf16.msra.mxu0 0
    %1371 = vmatprep.subr.bf16.mxu0 0
    %1372 = vmatpush1.bf16.msra.mxu0 0
    %1373 = vmatprep.subr.bf16.mxu0 0
    %1374 = vmatpush1.bf16.msra.mxu0 0
    %1375 = vmatprep.subr.bf16.mxu0 0
    %1376 = vmatpush1.bf16.msra.mxu0 0
    %1377 = vmatprep.subr.bf16.mxu0 0
    %1378 = vmatpush1.bf16.msra.mxu0 0
    %1379 = vmatprep.mubr.bf16.mxu0 0
    %1380 = vmatmul.mubr.bf16.gmra.mrb[0].mxu0 %v780
    %v1381 = vpop.f32.mrb[0].mxu0
    %v1382 = vadd.f32 0.0, %v1381
    %v1383 = vpop.f32.mrb[0].mxu0
    %v1384 = vpop.f32.mrb[0].mxu0
    %v1385 = vpop.f32.mrb[0].mxu0
    %1386 = vdwg.mxu0
    %v1387 = vadd.f32 %v1318, %v1382
    %v1388 = vld [vmem:[%s14] sm:$0x1]
    %v1390 = vlaneseq
    %v1391 = vshrl.u32 %v1390, 7
    %v1392 = vsub.s32 0, %v1391
    %v1393 = vrot.slane %v1388, %v1392
    %v1395 = vadd.f32 %v1387, %v1393
    %1396 = vst [vmem:[#allocation17] sm:$0x3] %v1395
    %1397 = vst [vmem:[#allocation18] sm:$0x3] %v1161
    // Predicated region
    $region98: #{tpu_custom_call.1} parent=1 // pred_check
      _
    $region99: #{tpu_custom_call.1} parent=1 // pred_check_branch
      %1399 = sbr.rel (0) target = $region101
    $region100: #{tpu_custom_call.1} parent=1 // pred_region
      %s1401 = ssub.s32 32, 32
      %1402 = vsyncadd [#allocation4], %s1401
      %s1404 = sshll.u32 [#allocation17], 4
      %s1405 = int_to_ptr.vmem [resolvable:$true] %s1404
      %1407 = dma.vmem_to_hbm [thread:$0]  %s1405, 32, %s15, [#allocation4]
    $region101: #{tpu_custom_call.1} parent=1 // pred_fallthru
      _
    // Predicated region
    $region102: #{tpu_custom_call.1} parent=1 // pred_check
      _
    $region103: #{tpu_custom_call.1} parent=1 // pred_check_branch
      %1409 = sbr.rel (0) target = $region105
    $region104: #{tpu_custom_call.1} parent=1 // pred_region
      %s1411 = ssub.s32 32, 32
      %1412 = vsyncadd [#allocation19], %s1411
      %s1414 = sshll.u32 [#allocation18], 4
      %s1415 = int_to_ptr.vmem [resolvable:$true] %s1414
      %1417 = dma.vmem_to_hbm [thread:$0]  %s1415, 32, %s16, [#allocation19]
    $region105: #{tpu_custom_call.1} parent=1 // pred_fallthru
      _
    // Predicated region
    $region106: #{tpu_custom_call.1} parent=1 // pred_check
      _
    $region107: #{tpu_custom_call.1} parent=1 // pred_check_branch
      %1419 = sbr.rel (0) target = $region109
    $region108: #{tpu_custom_call.1} parent=1 // pred_region
      %1420 = dma.done [#allocation4], 32
    $region109: #{tpu_custom_call.1} parent=1 // pred_fallthru
      _
    // Predicated region
    $region110: #{tpu_custom_call.1} parent=1 // pred_check
      _
    $region111: #{tpu_custom_call.1} parent=1 // pred_check_branch
      %1422 = sbr.rel (0) target = $region113
    $region112: #{tpu_custom_call.1} parent=1 // pred_region
      %1423 = dma.done [#allocation19], 32
    $region113: #{tpu_custom_call.1} parent=1 // pred_fallthru
      _
    %1424 = vsyncpa [#allocation3], 1
    %1425 = vsyncpa [#allocation6], 1
    %1426 = vsyncpa [#allocation9], 1
    %1427 = vsyncpa [#allocation12], 1
    %1428 = vsyncpa [#allocation15], 1
    %1429 = vsyncpa [#allocation4], 1
    %1430 = vsyncpa [#allocation19], 1

</llo_original>
